<compile_context>
chip_gen: v6e
topology: v6e:2x2x1
jax: 0.10.0
libtpu: 0.0.40
codegen_flags: <defaults>
</compile_context>

<pallas_src>
import functools
import math

import jax
import jax.numpy as jnp
from jax import lax
from jax.experimental import pallas as pl
from jax.experimental.pallas import tpu as pltpu

TN = 128        # output-channel tile (lane dimension)
TM_MIN = 512    # minimum row tile (sublane dimension)


def _cdiv(a, b):
    return -(-a // b)


def _round_up(x, m):
    return _cdiv(x, m) * m


# ----------------------------------------------------------------------------
# Pallas kernel: tap-unrolled GEMM with fused bias + ReLU epilogue.
#
# Grid = (Cout tiles, M tiles); both axes are parallel (no reduction axis).
# x0_ref / x1_ref are two CONSECUTIVE TM-row blocks of the flattened halo-
# padded activation; tap t reads rows [off_t, off_t + TM) of their
# concatenation, i.e. a statically shifted window -- no im2col patch matrix.
# ----------------------------------------------------------------------------
def _convt_gemm_kernel(x0_ref, x1_ref, w_ref, b_ref, o_ref, *, tap_offsets, tm):
    xx = jnp.concatenate([x0_ref[...], x1_ref[...]], axis=0)     # (2*TM, Cin) bf16
    acc = jnp.zeros(o_ref.shape, jnp.float32)
    for t, off in enumerate(tap_offsets):                        # static unroll
        acc += jnp.dot(xx[off:off + tm, :], w_ref[t],
                       preferred_element_type=jnp.float32)       # MXU, f32 acc
    o_ref[...] = jnp.maximum(acc + b_ref[...], 0.0)              # BN bias + ReLU


def _subpixel_gemm(xflat, wmat, bias_row, m_valid, tm, tap_offsets):
    """xflat   : ((nI+1)*tm, Cin) bf16  flattened halo-padded activation
       wmat    : (T, Cin, Npad)   bf16  sub-pixel weight (BN scale folded in)
       bias_row: (1, Npad)        f32   fused BN bias
       returns (m_valid, Npad) f32 = ReLU(sum_t shift_t(xflat) @ wmat[t] + b)."""
    n_rows, cin = xflat.shape
    n_i = n_rows // tm - 1
    t, _, npad = wmat.shape
    n_j = npad // TN

    flops = 2 * n_i * tm * t * cin * npad
    bytes_accessed = (2 * n_rows * cin * 2                  # activation ~2x (bf16)
                      + n_j * wmat.size * 2
                      + bias_row.size * 4
                      + n_i * tm * npad * 4)                # f32 output

    out = pl.pallas_call(
        functools.partial(_convt_gemm_kernel, tap_offsets=tap_offsets, tm=tm),
        out_shape=jax.ShapeDtypeStruct((n_i * tm, npad), jnp.float32),
        grid_spec=pltpu.PrefetchScalarGridSpec(
            num_scalar_prefetch=0,
            grid=(n_j, n_i),                                 # i innermost: streams rows
            in_specs=[
                pl.BlockSpec((tm, cin), lambda j, i: (i, 0)),        # rows [i*TM, (i+1)*TM)
                pl.BlockSpec((tm, cin), lambda j, i: (i + 1, 0)),    # next TM rows (halo)
                pl.BlockSpec((t, cin, TN), lambda j, i: (0, 0, j)),  # all taps, one Cout tile
                pl.BlockSpec((1, TN), lambda j, i: (0, j)),
            ],
            out_specs=pl.BlockSpec((tm, TN), lambda j, i: (i, j)),
        ),
        compiler_params=pltpu.CompilerParams(
            dimension_semantics=("parallel", "parallel")),
        cost_estimate=pl.CostEstimate(flops=flops, transcendentals=0,
                                      bytes_accessed=bytes_accessed),
    )(xflat, xflat, wmat, bias_row)
    return out[:m_valid]


# ----------------------------------------------------------------------------
# Parameter preparation (runs ONCE, outside the jitted forward).
# ----------------------------------------------------------------------------
def prepare_convt_params(w, gamma, beta, running_mean, running_var, *,
                         kernel_size, stride, eps=1e-5):
    """Fold eval-mode BatchNorm into the ConvTranspose2d weight and lay it out
    for the sub-pixel GEMM:  wmat[dy*D+dx, ci, (ry*s+rx)*Cout+co]."""
    k, s = kernel_size, stride
    cin, cout = int(w.shape[0]), int(w.shape[1])
    d = _cdiv(k, s)

    scale = gamma / jnp.sqrt(running_var + eps)              # (Cout,)
    bias = beta - running_mean * scale                       # (Cout,)
    wf = w.astype(jnp.float32) * scale[None, :, None, None]  # fold BN scale

    wsub = jnp.zeros((d, d, cin, s, s, cout), jnp.float32)
    for dy in range(d):
        for dx in range(d):
            for ry in range(s):
                for rx in range(s):
                    ky = ry + (d - 1 - dy) * s
                    kx = rx + (d - 1 - dx) * s
                    if ky < k and kx < k:
                        wsub = wsub.at[dy, dx, :, ry, rx, :].set(wf[:, :, ky, kx])

    n_out = s * s * cout
    npad = _round_up(n_out, TN)
    wmat = wsub.reshape(d * d, cin, n_out)
    wmat = jnp.pad(wmat, ((0, 0), (0, 0), (0, npad - n_out))).astype(jnp.bfloat16)
    bias_row = jnp.pad(jnp.tile(bias, s * s), (0, npad - n_out))
    return wmat, bias_row.reshape(1, npad).astype(jnp.float32)


# ----------------------------------------------------------------------------
# Forward pass: NCHW in, NCHW out.
# ----------------------------------------------------------------------------
@functools.partial(jax.jit,
                   static_argnames=("kernel_size", "stride", "padding",
                                    "out_channels"))
def convt_forward(x_nchw, wmat, bias_row, *, kernel_size, stride, padding,
                  out_channels):
    """ReLU(eval-BN(ConvTranspose2d(x, bias=False))) via one fused Pallas GEMM."""
    k, s, p, cout = kernel_size, stride, padding, out_channels
    assert 0 <= p < k, "padding >= kernel_size not supported"
    n, cin, h, w_in = x_nchw.shape
    d = _cdiv(k, s)
    assert wmat.shape[0] == d * d and wmat.shape[1] == cin

    ho = (h - 1) * s - 2 * p + k
    wo = (w_in - 1) * s - 2 * p + k

    # Halo-pad the (un-dilated!) activation so every sub-pixel output row is
    # computed from in-bounds input rows.
    pad_lo = d - 1 - p // s
    pad_hi = (k - p - 1) // s
    x = jnp.transpose(x_nchw, (0, 2, 3, 1))                       # NHWC
    xe = jnp.pad(x, ((0, 0), (pad_lo, pad_hi), (pad_lo, pad_hi), (0, 0)))
    he, we = xe.shape[1], xe.shape[2]

    # Flatten (n, y, x) to rows; tap (dy, dx) is a shift of dy*we + dx rows.
    tap_offsets = tuple(dy * we + dx for dy in range(d) for dx in range(d))
    tm = max(TM_MIN, _round_up(tap_offsets[-1] + 1, 128))
    m = n * he * we
    n_i = _cdiv(m, tm)
    xflat = xe.reshape(m, cin).astype(jnp.bfloat16)
    xflat = jnp.pad(xflat, ((0, (n_i + 1) * tm - m), (0, 0)))     # halo + tile pad

    gemm = _subpixel_gemm(xflat, wmat, bias_row, m, tm, tap_offsets)

    # Drop channel padding, then pixel-shuffle the s*s sub-grids into place.
    sub = gemm[:, :s * s * cout].reshape(n, he, we, s, s, cout)
    y = jnp.zeros((n, ho, wo, cout), jnp.float32)
    pm = p % s
    for ry in range(s):
        jy0 = 0 if ry >= pm else 1
        oy0 = s * jy0 + ry - pm
        if oy0 >= ho:
            continue
        ny = (ho - 1 - oy0) // s + 1
        for rx in range(s):
            jx0 = 0 if rx >= pm else 1
            ox0 = s * jx0 + rx - pm
            if ox0 >= wo:
                continue
            nx = (wo - 1 - ox0) // s + 1
            y = y.at[:, oy0:oy0 + (ny - 1) * s + 1:s,
                        ox0:ox0 + (nx - 1) * s + 1:s, :].set(
                sub[:, jy0:jy0 + ny, jx0:jx0 + nx, ry, rx, :])
    return jnp.transpose(y, (0, 3, 1, 2))                          # NCHW


# ----------------------------------------------------------------------------
# Pure-XLA reference (same bf16-input / f32-accumulate numerics).
# ----------------------------------------------------------------------------
def _reference_convt(x_nchw, w, gamma, beta, mean, var, *, kernel_size, stride,
                     padding, eps=1e-5):
    k, s, p = kernel_size, stride, padding
    scale = gamma / jnp.sqrt(var + eps)
    bias = beta - mean * scale
    x = jnp.transpose(x_nchw, (0, 2, 3, 1)).astype(jnp.bfloat16)
    wf = (w.astype(jnp.float32) * scale[None, :, None, None]).astype(jnp.bfloat16)
    rhs = jnp.transpose(wf[:, :, ::-1, ::-1], (2, 3, 0, 1))        # (k,k,Cin,Cout)
    y = lax.conv_general_dilated(
        x, rhs, window_strides=(1, 1),
        padding=[(k - 1 - p, k - 1 - p)] * 2,
        lhs_dilation=(s, s),
        dimension_numbers=("NHWC", "HWIO", "NHWC"),
        preferred_element_type=jnp.float32)
    y = jnp.maximum(y + bias[None, None, None, :], 0.0)
    return jnp.transpose(y, (0, 3, 1, 2))


if __name__ == "__main__":
    key = jax.random.PRNGKey(0)

    # (N, Cin, H, W, Cout, kernel_size, stride, padding)
    configs = [
        (2, 4, 16, 16, 8, 4, 2, 1),   # stride-2 up-conv (sub-pixel path)
        (2, 4, 16, 16, 8, 3, 1, 1),   # stride-1 transposed conv
        (2, 3, 9, 9, 5, 5, 3, 2),     # k % s != 0, odd spatial sizes
    ]
    for n, cin, h, w_sp, cout, k, s, p in configs:
        key, kx, kw = jax.random.split(key, 3)
        x = jax.random.normal(kx, (n, cin, h, w_sp), jnp.float32)
        bound = 1.0 / math.sqrt(cout * k * k)           # PyTorch-style init scale
        w = jax.random.uniform(kw, (cin, cout, k, k), jnp.float32, -bound, bound)
        gamma = jnp.ones((cout,), jnp.float32)          # fresh BatchNorm2d stats
        beta = jnp.zeros((cout,), jnp.float32)
        mean = jnp.zeros((cout,), jnp.float32)
        var = jnp.ones((cout,), jnp.float32)

        wmat, bias_row = prepare_convt_params(
            w, gamma, beta, mean, var, kernel_size=k, stride=s)
        y = convt_forward(x, wmat, bias_row, kernel_size=k, stride=s,
                          padding=p, out_channels=cout)
        jax.block_until_ready(y)

        ho = (h - 1) * s - 2 * p + k
        wo = (w_sp - 1) * s - 2 * p + k
        assert y.shape == (n, cout, ho, wo), y.shape

        y_ref = _reference_convt(x, w, gamma, beta, mean, var,
                                 kernel_size=k, stride=s, padding=p)
        err = float(jnp.max(jnp.abs(y - y_ref)))
        assert err < 2e-2, f"max |err| = {err} for config k={k} s={s} p={p}"

    print("KERNEL_OK")
</pallas_src>

<mosaic_0001>
module attributes {stable_mosaic.version = 11 : i64} {
  func.func @_convt_gemm_kernel(%arg0: i32, %arg1: i32, %arg2: memref<512x4xbf16, #tpu.memory_space<vmem>>, %arg3: memref<512x4xbf16, #tpu.memory_space<vmem>>, %arg4: memref<4x4x128xbf16, #tpu.memory_space<vmem>>, %arg5: memref<1x128xf32, #tpu.memory_space<vmem>>, %arg6: memref<512x128xf32, #tpu.memory_space<vmem>>) attributes {dimension_semantics = [#tpu.dimension_semantics<parallel>, #tpu.dimension_semantics<parallel>], iteration_bounds = array<i64: 1, 2>, scalar_prefetch = 0 : i64, scratch_operands = 0 : i64, tpu.core_type = #tpu.core_type<tc>, window_params = [{transform_indices = @transform_0, window_bounds = array<i64: 512, 4>}, {transform_indices = @transform_1, window_bounds = array<i64: 512, 4>}, {transform_indices = @transform_2, window_bounds = array<i64: 4, 4, 128>}, {transform_indices = @transform_3, window_bounds = array<i64: 1, 128>}, {transform_indices = @transform_4, window_bounds = array<i64: 512, 128>}]} {
    %c0 = arith.constant 0 : index
    %c0_0 = arith.constant 0 : index
    %0 = vector.load %arg2[%c0, %c0_0] : memref<512x4xbf16, #tpu.memory_space<vmem>>, vector<512x4xbf16>
    %c0_1 = arith.constant 0 : index
    %c0_2 = arith.constant 0 : index
    %1 = vector.load %arg3[%c0_1, %c0_2] : memref<512x4xbf16, #tpu.memory_space<vmem>>, vector<512x4xbf16>
    %2 = tpu.concatenate %0, %1 in 0 : vector<512x4xbf16>, vector<512x4xbf16> -> vector<1024x4xbf16>
    %cst = arith.constant 0.000000e+00 : f32
    %3 = vector.broadcast %cst : f32 to vector<512x128xf32>
    %4 = vector.extract_strided_slice %2 {offsets = [0, 0], sizes = [512, 4], strides = [1, 1]} : vector<1024x4xbf16> to vector<512x4xbf16>
    %c0_3 = arith.constant 0 : index
    %c0_4 = arith.constant 0 : index
    %c0_5 = arith.constant 0 : index
    %5 = vector.load %arg4[%c0_3, %c0_4, %c0_5] : memref<4x4x128xbf16, #tpu.memory_space<vmem>>, vector<1x4x128xbf16>
    %6 = vector.shape_cast %5 : vector<1x4x128xbf16> to vector<4x128xbf16>
    %cst_6 = arith.constant dense<0.000000e+00> : vector<512x128xf32>
    %7 = tpu.matmul %4, %6, %cst_6 {dimension_numbers = #tpu.dot_dimension_numbers<[1], [0], [0], [1], [0, 0, 1, 1], [], []>} : vector<512x4xbf16>, vector<4x128xbf16>, vector<512x128xf32> -> vector<512x128xf32>
    %8 = arith.addf %3, %7 : vector<512x128xf32>
    %9 = vector.extract_strided_slice %2 {offsets = [1, 0], sizes = [512, 4], strides = [1, 1]} : vector<1024x4xbf16> to vector<512x4xbf16>
    %c1 = arith.constant 1 : index
    %c0_7 = arith.constant 0 : index
    %c0_8 = arith.constant 0 : index
    %10 = vector.load %arg4[%c1, %c0_7, %c0_8] : memref<4x4x128xbf16, #tpu.memory_space<vmem>>, vector<1x4x128xbf16>
    %11 = vector.shape_cast %10 : vector<1x4x128xbf16> to vector<4x128xbf16>
    %cst_9 = arith.constant dense<0.000000e+00> : vector<512x128xf32>
    %12 = tpu.matmul %9, %11, %cst_9 {dimension_numbers = #tpu.dot_dimension_numbers<[1], [0], [0], [1], [0, 0, 1, 1], [], []>} : vector<512x4xbf16>, vector<4x128xbf16>, vector<512x128xf32> -> vector<512x128xf32>
    %13 = arith.addf %8, %12 : vector<512x128xf32>
    %14 = vector.extract_strided_slice %2 {offsets = [18, 0], sizes = [512, 4], strides = [1, 1]} : vector<1024x4xbf16> to vector<512x4xbf16>
    %c2 = arith.constant 2 : index
    %c0_10 = arith.constant 0 : index
    %c0_11 = arith.constant 0 : index
    %15 = vector.load %arg4[%c2, %c0_10, %c0_11] : memref<4x4x128xbf16, #tpu.memory_space<vmem>>, vector<1x4x128xbf16>
    %16 = vector.shape_cast %15 : vector<1x4x128xbf16> to vector<4x128xbf16>
    %cst_12 = arith.constant dense<0.000000e+00> : vector<512x128xf32>
    %17 = tpu.matmul %14, %16, %cst_12 {dimension_numbers = #tpu.dot_dimension_numbers<[1], [0], [0], [1], [0, 0, 1, 1], [], []>} : vector<512x4xbf16>, vector<4x128xbf16>, vector<512x128xf32> -> vector<512x128xf32>
    %18 = arith.addf %13, %17 : vector<512x128xf32>
    %19 = vector.extract_strided_slice %2 {offsets = [19, 0], sizes = [512, 4], strides = [1, 1]} : vector<1024x4xbf16> to vector<512x4xbf16>
    %c3 = arith.constant 3 : index
    %c0_13 = arith.constant 0 : index
    %c0_14 = arith.constant 0 : index
    %20 = vector.load %arg4[%c3, %c0_13, %c0_14] : memref<4x4x128xbf16, #tpu.memory_space<vmem>>, vector<1x4x128xbf16>
    %21 = vector.shape_cast %20 : vector<1x4x128xbf16> to vector<4x128xbf16>
    %cst_15 = arith.constant dense<0.000000e+00> : vector<512x128xf32>
    %22 = tpu.matmul %19, %21, %cst_15 {dimension_numbers = #tpu.dot_dimension_numbers<[1], [0], [0], [1], [0, 0, 1, 1], [], []>} : vector<512x4xbf16>, vector<4x128xbf16>, vector<512x128xf32> -> vector<512x128xf32>
    %23 = arith.addf %18, %22 : vector<512x128xf32>
    %c0_16 = arith.constant 0 : index
    %c0_17 = arith.constant 0 : index
    %24 = vector.load %arg5[%c0_16, %c0_17] : memref<1x128xf32, #tpu.memory_space<vmem>>, vector<1x128xf32>
    %25 = vector.broadcast %24 : vector<1x128xf32> to vector<512x128xf32>
    %26 = arith.addf %23, %25 : vector<512x128xf32>
    %cst_18 = arith.constant 0.000000e+00 : f32
    %27 = vector.broadcast %cst_18 : f32 to vector<512x128xf32>
    %28 = arith.maximumf %26, %27 : vector<512x128xf32>
    %c0_19 = arith.constant 0 : index
    %c0_20 = arith.constant 0 : index
    %29 = vector.load %arg6[%c0_19, %c0_20] : memref<512x128xf32, #tpu.memory_space<vmem>>, vector<512x128xf32>
    tpu.vector_store %arg6[%c0_19, %c0_20], %28 {strides = array<i32>} : memref<512x128xf32, #tpu.memory_space<vmem>>, vector<512x128xf32>,
    return
  }
  func.func @transform_0(%arg0: i32, %arg1: i32) -> (i32, i32) {
    %c0_i32 = arith.constant 0 : i32
    %c0_i32_0 = arith.constant 0 : i32
    return %arg1, %c0_i32 : i32, i32
  }
  func.func @transform_1(%arg0: i32, %arg1: i32) -> (i32, i32) {
    %c1_i32 = arith.constant 1 : i32
    %0 = arith.addi %arg1, %c1_i32 : i32
    %c0_i32 = arith.constant 0 : i32
    %c0_i32_0 = arith.constant 0 : i32
    return %0, %c0_i32 : i32, i32
  }
  func.func @transform_2(%arg0: i32, %arg1: i32) -> (i32, i32, i32) {
    %c0_i32 = arith.constant 0 : i32
    %c0_i32_0 = arith.constant 0 : i32
    %c0_i32_1 = arith.constant 0 : i32
    return %c0_i32, %c0_i32_0, %arg0 : i32, i32, i32
  }
  func.func @transform_3(%arg0: i32, %arg1: i32) -> (i32, i32) {
    %c0_i32 = arith.constant 0 : i32
    %c0_i32_0 = arith.constant 0 : i32
    return %c0_i32, %arg0 : i32, i32
  }
  func.func @transform_4(%arg0: i32, %arg1: i32) -> (i32, i32) {
    %c0_i32 = arith.constant 0 : i32
    return %arg1, %arg0 : i32, i32
  }
}

</mosaic_0001>

<llo_original>
// kernel: convt_forward.1
$region0: #{convt_forward.1}
  #allocation0 [shape = 'u32[]', space=smem, size = 0x4, offset = 0x4, fixed_abs, tag = 'smem constant byte address 0x4 - core index']
  #allocation1 [shape = 'u32[144,128]{1,0:T(1,128)}', space=vmem, size = 0x12000, scoped, tag = 'internal scratch']
  %s0 = inlined_call_operand.vmem [shape: bf16[1536,4], index: 0, kind: input, shape index: {}, may-alias: {0,1}]
  %s1 = inlined_call_operand.vmem [shape: bf16[1536,4], index: 1, kind: input, shape index: {}, may-alias: {0,1}]
  %s2 = inlined_call_operand.vmem [shape: bf16[4,4,128], index: 2, kind: input, shape index: {}]
  %s3 = inlined_call_operand.vmem [shape: f32[1,128], index: 3, kind: input, shape index: {}]
  %s4 = inlined_call_operand.vmem [shape: f32[1024,128], index: 4, kind: output, shape index: {}]
  %s5 = sld [smem:[#allocation0]]
  $region49: #{convt_forward.1} parent=0
    _
  %s7 = ssub.s32 1, %s5
  %s8 = scalar_select 0, %s7, %s5
  loop: start=0, step=1, limit=4
  $region2: #{convt_forward.1} parent=0 // loop_pre_header
    _
  $region3: #{convt_forward.1} parent=0 // loop_header
    %s10 = sphi 0, %s14
    %p11 = scmp.ge.s32.totalorder %s10, 4
    %s17 = sphi 0, %s29
    %s18 = sphi 0, %s25
    %s19 = sphi 0, %s17
    %s20 = sphi 0, %s18
    %s21 = sphi 0, %s19
    %s22 = sphi 0, %s20
    %s32 = sphi 0, %s34
    %s35 = sphi 0, %s32
    %s36 = sphi 0, %s35
    %s52 = sphi 0, %s36
    %s60 = sphi 0, %s62
    %s63 = sphi 0, %s60
    %s64 = sphi 0, %s63
    %s80 = sphi 0, %s64
    %s86 = sphi 0, %s88
    %s89 = sphi 0, %s86
    %s90 = sphi 0, %s89
    %s106 = sphi 0, %s90
    %s112 = sphi 0, %s114
    %s115 = sphi 0, %s112
    %s116 = sphi 0, %s115
    %s132 = sphi 0, %s116
    %s140 = sphi 0, %s142
    %s143 = sphi 0, %s140
    %s144 = sphi 0, %s143
    %s160 = sphi 0, %s144
  $region4: #{convt_forward.1} parent=0 // loop_header_branch
    %13 = sbr.rel (%p11) target = $region8
  $region5: #{convt_forward.1} parent=0 // loop_body
    %s15 = ssub.s32 %s10, 1
    %s16 = ssub.s32 %s10, 2
    %s23 = sadd.s32 1, %s18
    %p24 = scmp.ge.s32.totalorder %s23, 2
    %s25 = scalar_select %p24, 0, %s23
    %s26 = sadd.s32 1, %s17
    %s27 = scalar_select %p24, %s26, %s17
    %p28 = scmp.ge.s32.totalorder %s27, 1
    %s29 = scalar_select %p28, 0, %s27
    %s30 = ssub.s32 %s18, %s25
    %p31 = scmp.eq.s32.totalorder %s30, 0
    %s33 = sadd.s32 %s32, 1
    %s34 = scalar_select %p31, %s32, %s33
    %p37 = pneg %p31
    %p38 = scmp.eq.s32.totalorder %s10, 1
    %p39 = por %p37, %p38
    %p40 = scmp.ne.s32.totalorder %s32, %s35
    %p41 = scmp.eq.s32.totalorder %s10, 0
    %p42 = por %p40, %p41
    %p43 = scmp.ne.s32.totalorder %s32, %s35
    %p44 = scmp.eq.s32.totalorder %s15, 1
    %p45 = por %p43, %p44
    %p46 = scmp.ne.s32.totalorder %s35, %s36
    %p47 = scmp.eq.s32.totalorder %s15, 0
    %p48 = por %p46, %p47
    %p49 = scmp.ne.s32.totalorder %s35, %s36
    %p50 = scmp.eq.s32.totalorder %s16, 1
    %p51 = por %p49, %p50
    %p53 = scmp.ne.s32.totalorder %s36, %s52
    %p54 = scmp.eq.s32.totalorder %s16, 0
    %p55 = por %p53, %p54
    %s56 = sadd.s32 %s18, 1
    %s57 = sadd.s32 %s25, 1
    %s58 = ssub.s32 %s56, %s57
    %p59 = scmp.eq.s32.totalorder %s58, 0
    %s61 = sadd.s32 %s60, 1
    %s62 = scalar_select %p59, %s60, %s61
    %p65 = pneg %p59
    %p66 = scmp.eq.s32.totalorder %s10, 1
    %p67 = por %p65, %p66
    %p68 = scmp.ne.s32.totalorder %s60, %s63
    %p69 = scmp.eq.s32.totalorder %s10, 0
    %p70 = por %p68, %p69
    %p71 = scmp.ne.s32.totalorder %s60, %s63
    %p72 = scmp.eq.s32.totalorder %s15, 1
    %p73 = por %p71, %p72
    %p74 = scmp.ne.s32.totalorder %s63, %s64
    %p75 = scmp.eq.s32.totalorder %s15, 0
    %p76 = por %p74, %p75
    %p77 = scmp.ne.s32.totalorder %s63, %s64
    %p78 = scmp.eq.s32.totalorder %s16, 1
    %p79 = por %p77, %p78
    %p81 = scmp.ne.s32.totalorder %s64, %s80
    %p82 = scmp.eq.s32.totalorder %s16, 0
    %p83 = por %p81, %p82
    %s84 = ssub.s32 %s17, %s29
    %p85 = scmp.eq.s32.totalorder %s84, 0
    %s87 = sadd.s32 %s86, 1
    %s88 = scalar_select %p85, %s86, %s87
    %p91 = pneg %p85
    %p92 = scmp.eq.s32.totalorder %s10, 1
    %p93 = por %p91, %p92
    %p94 = scmp.ne.s32.totalorder %s86, %s89
    %p95 = scmp.eq.s32.totalorder %s10, 0
    %p96 = por %p94, %p95
    %p97 = scmp.ne.s32.totalorder %s86, %s89
    %p98 = scmp.eq.s32.totalorder %s15, 1
    %p99 = por %p97, %p98
    %p100 = scmp.ne.s32.totalorder %s89, %s90
    %p101 = scmp.eq.s32.totalorder %s15, 0
    %p102 = por %p100, %p101
    %p103 = scmp.ne.s32.totalorder %s89, %s90
    %p104 = scmp.eq.s32.totalorder %s16, 1
    %p105 = por %p103, %p104
    %p107 = scmp.ne.s32.totalorder %s90, %s106
    %p108 = scmp.eq.s32.totalorder %s16, 0
    %p109 = por %p107, %p108
    %s110 = ssub.s32 %s17, %s29
    %p111 = scmp.eq.s32.totalorder %s110, 0
    %s113 = sadd.s32 %s112, 1
    %s114 = scalar_select %p111, %s112, %s113
    %p117 = pneg %p111
    %p118 = scmp.eq.s32.totalorder %s10, 1
    %p119 = por %p117, %p118
    %p120 = scmp.ne.s32.totalorder %s112, %s115
    %p121 = scmp.eq.s32.totalorder %s10, 0
    %p122 = por %p120, %p121
    %p123 = scmp.ne.s32.totalorder %s112, %s115
    %p124 = scmp.eq.s32.totalorder %s15, 1
    %p125 = por %p123, %p124
    %p126 = scmp.ne.s32.totalorder %s115, %s116
    %p127 = scmp.eq.s32.totalorder %s15, 0
    %p128 = por %p126, %p127
    %p129 = scmp.ne.s32.totalorder %s115, %s116
    %p130 = scmp.eq.s32.totalorder %s16, 1
    %p131 = por %p129, %p130
    %p133 = scmp.ne.s32.totalorder %s116, %s132
    %p134 = scmp.eq.s32.totalorder %s16, 0
    %p135 = por %p133, %p134
    %s136 = ssub.s32 %s18, %s25
    %s137 = ssub.s32 %s17, %s29
    %s138 = sor.u32 %s136, %s137
    %p139 = scmp.eq.s32.totalorder %s138, 0
    %s141 = sadd.s32 %s140, 1
    %s142 = scalar_select %p139, %s140, %s141
    %p145 = pneg %p139
    %p146 = scmp.eq.s32.totalorder %s10, 1
    %p147 = por %p145, %p146
    %p148 = scmp.ne.s32.totalorder %s140, %s143
    %p149 = scmp.eq.s32.totalorder %s10, 0
    %p150 = por %p148, %p149
    %p151 = scmp.ne.s32.totalorder %s140, %s143
    %p152 = scmp.eq.s32.totalorder %s15, 1
    %p153 = por %p151, %p152
    %p154 = scmp.ne.s32.totalorder %s143, %s144
    %p155 = scmp.eq.s32.totalorder %s15, 0
    %p156 = por %p154, %p155
    %p157 = scmp.ne.s32.totalorder %s143, %s144
    %p158 = scmp.eq.s32.totalorder %s16, 1
    %p159 = por %p157, %p158
    %p161 = scmp.ne.s32.totalorder %s144, %s160
    %p162 = scmp.eq.s32.totalorder %s16, 0
    %p163 = por %p161, %p162
    %p164 = scmp.le.s32.totalorder 1, %s10
    %p165 = scmp.lt.s32.totalorder %s10, 3
    %p166 = pnand %p164, %p165
    %p167 = pneg %p166
    // Predicated region
    $region9: #{convt_forward.1} parent=5 // pred_check
      _
    $region10: #{convt_forward.1} parent=5 // pred_check_branch
      %169 = sbr.rel (%p166) target = $region12
    $region11: #{convt_forward.1} parent=5 // pred_region
      %s170 = ssub.s32 %s10, 1
      // Predicated region
      $region13: #{convt_forward.1} parent=11 // pred_check
        %p171 = pneg %p102
      $region14: #{convt_forward.1} parent=11 // pred_check_branch
        %173 = sbr.rel (%p171) target = $region16
      $region15: #{convt_forward.1} parent=11 // pred_region
        %p174 = scmp.lt.s32.totalorder %s19, 0
        %s175 = scalar_select %p174, %s19, 0
        %s176 = smul.addr %s175, 2
        %s177 = scalar_lea.vmem %s2, %s176
      $region16: #{convt_forward.1} parent=11 // pred_fallthru
        _
      // Predicated region
      $region17: #{convt_forward.1} parent=11 // pred_check
        %p178 = pneg %p128
      $region18: #{convt_forward.1} parent=11 // pred_check_branch
        %180 = sbr.rel (%p178) target = $region20
      $region19: #{convt_forward.1} parent=11 // pred_region
        %p181 = scmp.lt.s32.totalorder %s19, 0
        %s182 = scalar_select %p181, %s19, 0
        %s183 = scalar_lea.vmem %s3, %s182
      $region20: #{convt_forward.1} parent=11 // pred_fallthru
        _
    $region12: #{convt_forward.1} parent=5 // pred_fallthru
      _
    %p184 = scmp.lt.s32.totalorder %s10, 2
    // Predicated region
    $region21: #{convt_forward.1} parent=5 // pred_check
      %p185 = pneg %p184
    $region22: #{convt_forward.1} parent=5 // pred_check_branch
      %187 = sbr.rel (%p185) target = $region24
    $region23: #{convt_forward.1} parent=5 // pred_region
      // Predicated region
      $region25: #{convt_forward.1} parent=23 // pred_check
        %p188 = pneg %p42
      $region26: #{convt_forward.1} parent=23 // pred_check_branch
        %190 = sbr.rel (%p188) target = $region28
      $region27: #{convt_forward.1} parent=23 // pred_region
        %s191 = smul.u32 64, %s18
        %p192 = scmp.lt.s32.totalorder %s191, 191
        %s193 = scalar_select %p192, %s191, 191
        %s194 = smul.addr %s193, 4
        %s195 = scalar_lea.vmem %s0, %s194
        %s196 = smul.u32 64, %s18
      $region28: #{convt_forward.1} parent=23 // pred_fallthru
        _
      // Predicated region
      $region29: #{convt_forward.1} parent=23 // pred_check
        %p197 = pneg %p70
      $region30: #{convt_forward.1} parent=23 // pred_check_branch
        %199 = sbr.rel (%p197) target = $region32
      $region31: #{convt_forward.1} parent=23 // pred_region
        %s200 = sadd.s32 %s18, 1
        %s201 = smul.u32 64, %s200
        %p202 = scmp.lt.s32.totalorder %s201, 191
        %s203 = scalar_select %p202, %s201, 191
        %s204 = smul.addr %s203, 4
        %s205 = scalar_lea.vmem %s1, %s204
        %s206 = sadd.s32 %s18, 1
        %s207 = smul.u32 64, %s206
      $region32: #{convt_forward.1} parent=23 // pred_fallthru
        _
    $region24: #{convt_forward.1} parent=5 // pred_fallthru
      _
    %p208 = scmp.le.s32.totalorder 1, %s10
    %p209 = scmp.lt.s32.totalorder %s10, 3
    %p210 = pnand %p208, %p209
    %p211 = pneg %p210
    // Predicated region
    $region33: #{convt_forward.1} parent=5 // pred_check
      _
    $region34: #{convt_forward.1} parent=5 // pred_check_branch
      %213 = sbr.rel (%p210) target = $region36
    $region35: #{convt_forward.1} parent=5 // pred_region
      %s214 = ssub.s32 %s10, 1
      %s215 = smul.u32 64, %s20
      %p216 = scmp.lt.s32.totalorder %s215, 191
      %s217 = scalar_select %p216, %s215, 191
      %s218 = smul.addr %s217, 4
      %s219 = scalar_lea.vmem %s0, %s218
      %p220 = pneg %p48
      %p221 = pneg %p45
      %s222 = sadd.s32 %s20, 1
      %s223 = smul.u32 64, %s222
      %p224 = scmp.lt.s32.totalorder %s223, 191
      %s225 = scalar_select %p224, %s223, 191
      %s226 = smul.addr %s225, 4
      %s227 = scalar_lea.vmem %s1, %s226
      %p228 = pneg %p76
      %p229 = pneg %p73
      %p230 = scmp.lt.s32.totalorder %s19, 0
      %s231 = scalar_select %p230, %s19, 0
      %s232 = smul.addr %s231, 2
      %s233 = scalar_lea.vmem %s2, %s232
      %p234 = pneg %p102
      %p235 = pneg %p99
      %p236 = scmp.lt.s32.totalorder %s19, 0
      %s237 = scalar_select %p236, %s19, 0
      %s238 = scalar_lea.vmem %s3, %s237
      %p239 = pneg %p128
      %p240 = pneg %p125
      %p241 = pneg %p156
      %p242 = pneg %p153
      %s243 = smul.u32 64, %s20
      %p244 = scmp.lt.s32.totalorder %s243, 127
      %s245 = scalar_select %p244, %s243, 127
      %p246 = scmp.lt.s32.totalorder %s19, 0
      %s247 = scalar_select %p246, %s19, 0
      %s248 = sadd.s32 %s247, %s245
      %s249 = smul.addr %s248, 8
      %s250 = scalar_lea.vmem %s4, %s249
      %s251 = smul.u32 64, %s20
      %p252 = scmp.lt.s32.totalorder %s251, 191
      %s253 = scalar_select %p252, %s251, 191
      %s254 = smul.addr %s253, 4
      %s255 = scalar_lea.vmem %s0, %s254
      %s256 = smul.u32 64, %s20
      %s257 = sadd.s32 %s20, 1
      %s258 = smul.u32 64, %s257
      %p259 = scmp.lt.s32.totalorder %s258, 191
      %s260 = scalar_select %p259, %s258, 191
      %s261 = smul.addr %s260, 4
      %s262 = scalar_lea.vmem %s1, %s261
      %s263 = sadd.s32 %s20, 1
      %s264 = smul.u32 64, %s263
      %p265 = scmp.lt.s32.totalorder %s19, 0
      %s266 = scalar_select %p265, %s19, 0
      %s267 = smul.addr %s266, 2
      %s268 = scalar_lea.vmem %s2, %s267
      %p269 = scmp.lt.s32.totalorder %s19, 0
      %s270 = scalar_select %p269, %s19, 0
      %s271 = scalar_lea.vmem %s3, %s270
      %s272 = smul.u32 64, %s20
      %p273 = scmp.lt.s32.totalorder %s272, 127
      %s274 = scalar_select %p273, %s272, 127
      %p275 = scmp.lt.s32.totalorder %s19, 0
      %s276 = scalar_select %p275, %s19, 0
      %s277 = sadd.s32 %s276, %s274
      %s278 = smul.addr %s277, 8
      %s279 = scalar_lea.vmem %s4, %s278
      %s280 = smul.u32 64, %s20
      %v282 = vld [vmem:[%s255] sm:$0xf]
      %v283 = vld [vmem:[%s255 + $0x4] sm:$0xf]
      %v284 = vld [vmem:[%s255 + $0x8] sm:$0xf]
      %v285 = vld [vmem:[%s255 + $0xc] sm:$0xf]
      %v286 = vld [vmem:[%s255 + $0x10] sm:$0xf]
      %v287 = vld [vmem:[%s255 + $0x14] sm:$0xf]
      %v288 = vld [vmem:[%s255 + $0x18] sm:$0xf]
      %v289 = vld [vmem:[%s255 + $0x1c] sm:$0xf]
      %v290 = vld [vmem:[%s255 + $0x20] sm:$0xf]
      %v291 = vld [vmem:[%s255 + $0x24] sm:$0xf]
      %v292 = vld [vmem:[%s255 + $0x28] sm:$0xf]
      %v293 = vld [vmem:[%s255 + $0x2c] sm:$0xf]
      %v294 = vld [vmem:[%s255 + $0x30] sm:$0xf]
      %v295 = vld [vmem:[%s255 + $0x34] sm:$0xf]
      %v296 = vld [vmem:[%s255 + $0x38] sm:$0xf]
      %v297 = vld [vmem:[%s255 + $0x3c] sm:$0xf]
      %v298 = vld [vmem:[%s255 + $0x40] sm:$0xf]
      %v299 = vld [vmem:[%s255 + $0x44] sm:$0xf]
      %v300 = vld [vmem:[%s255 + $0x48] sm:$0xf]
      %v301 = vld [vmem:[%s255 + $0x4c] sm:$0xf]
      %v302 = vld [vmem:[%s255 + $0x50] sm:$0xf]
      %v303 = vld [vmem:[%s255 + $0x54] sm:$0xf]
      %v304 = vld [vmem:[%s255 + $0x58] sm:$0xf]
      %v305 = vld [vmem:[%s255 + $0x5c] sm:$0xf]
      %v306 = vld [vmem:[%s255 + $0x60] sm:$0xf]
      %v307 = vld [vmem:[%s255 + $0x64] sm:$0xf]
      %v308 = vld [vmem:[%s255 + $0x68] sm:$0xf]
      %v309 = vld [vmem:[%s255 + $0x6c] sm:$0xf]
      %v310 = vld [vmem:[%s255 + $0x70] sm:$0xf]
      %v311 = vld [vmem:[%s255 + $0x74] sm:$0xf]
      %v312 = vld [vmem:[%s255 + $0x78] sm:$0xf]
      %v313 = vld [vmem:[%s255 + $0x7c] sm:$0xf]
      %v314 = vld [vmem:[%s255 + $0x80] sm:$0xf]
      %v315 = vld [vmem:[%s255 + $0x84] sm:$0xf]
      %v316 = vld [vmem:[%s255 + $0x88] sm:$0xf]
      %v317 = vld [vmem:[%s255 + $0x8c] sm:$0xf]
      %v318 = vld [vmem:[%s255 + $0x90] sm:$0xf]
      %v319 = vld [vmem:[%s255 + $0x94] sm:$0xf]
      %v320 = vld [vmem:[%s255 + $0x98] sm:$0xf]
      %v321 = vld [vmem:[%s255 + $0x9c] sm:$0xf]
      %v322 = vld [vmem:[%s255 + $0xa0] sm:$0xf]
      %v323 = vld [vmem:[%s255 + $0xa4] sm:$0xf]
      %v324 = vld [vmem:[%s255 + $0xa8] sm:$0xf]
      %v325 = vld [vmem:[%s255 + $0xac] sm:$0xf]
      %v326 = vld [vmem:[%s255 + $0xb0] sm:$0xf]
      %v327 = vld [vmem:[%s255 + $0xb4] sm:$0xf]
      %v328 = vld [vmem:[%s255 + $0xb8] sm:$0xf]
      %v329 = vld [vmem:[%s255 + $0xbc] sm:$0xf]
      %v330 = vld [vmem:[%s255 + $0xc0] sm:$0xf]
      %v331 = vld [vmem:[%s255 + $0xc4] sm:$0xf]
      %v332 = vld [vmem:[%s255 + $0xc8] sm:$0xf]
      %v333 = vld [vmem:[%s255 + $0xcc] sm:$0xf]
      %v334 = vld [vmem:[%s255 + $0xd0] sm:$0xf]
      %v335 = vld [vmem:[%s255 + $0xd4] sm:$0xf]
      %v336 = vld [vmem:[%s255 + $0xd8] sm:$0xf]
      %v337 = vld [vmem:[%s255 + $0xdc] sm:$0xf]
      %v338 = vld [vmem:[%s255 + $0xe0] sm:$0xf]
      %v339 = vld [vmem:[%s255 + $0xe4] sm:$0xf]
      %v340 = vld [vmem:[%s255 + $0xe8] sm:$0xf]
      %v341 = vld [vmem:[%s255 + $0xec] sm:$0xf]
      %v342 = vld [vmem:[%s255 + $0xf0] sm:$0xf]
      %v343 = vld [vmem:[%s255 + $0xf4] sm:$0xf]
      %v344 = vld [vmem:[%s255 + $0xf8] sm:$0xf]
      %v345 = vld [vmem:[%s255 + $0xfc] sm:$0xf]
      %v346 = vld [vmem:[%s262] sm:$0xf]
      %v347 = vld [vmem:[%s262 + $0x4] sm:$0xf]
      %v348 = vld [vmem:[%s262 + $0x8] sm:$0xf]
      %v349 = vld [vmem:[%s262 + $0xc] sm:$0xf]
      %v414 = vunpack.c.l.b16 %v282
      %v415 = vunpack.c.l.b16 %v283
      %v416 = vunpack.c.l.b16 %v284
      %v417 = vunpack.c.l.b16 %v285
      %v418 = vunpack.c.l.b16 %v286
      %v419 = vunpack.c.l.b16 %v287
      %v420 = vunpack.c.l.b16 %v288
      %v421 = vunpack.c.l.b16 %v289
      %v422 = vunpack.c.l.b16 %v290
      %v423 = vunpack.c.l.b16 %v291
      %v424 = vunpack.c.l.b16 %v292
      %v425 = vunpack.c.l.b16 %v293
      %v426 = vunpack.c.l.b16 %v294
      %v427 = vunpack.c.l.b16 %v295
      %v428 = vunpack.c.l.b16 %v296
      %v429 = vunpack.c.l.b16 %v297
      %v430 = vunpack.c.l.b16 %v298
      %v431 = vunpack.c.l.b16 %v299
      %v432 = vunpack.c.l.b16 %v300
      %v433 = vunpack.c.l.b16 %v301
      %v434 = vunpack.c.l.b16 %v302
      %v435 = vunpack.c.l.b16 %v303
      %v436 = vunpack.c.l.b16 %v304
      %v437 = vunpack.c.l.b16 %v305
      %v438 = vunpack.c.l.b16 %v306
      %v439 = vunpack.c.l.b16 %v307
      %v440 = vunpack.c.l.b16 %v308
      %v441 = vunpack.c.l.b16 %v309
      %v442 = vunpack.c.l.b16 %v310
      %v443 = vunpack.c.l.b16 %v311
      %v444 = vunpack.c.l.b16 %v312
      %v445 = vunpack.c.l.b16 %v313
      %v446 = vunpack.c.l.b16 %v314
      %v447 = vunpack.c.l.b16 %v315
      %v448 = vunpack.c.l.b16 %v316
      %v449 = vunpack.c.l.b16 %v317
      %v450 = vunpack.c.l.b16 %v318
      %v451 = vunpack.c.l.b16 %v319
      %v452 = vunpack.c.l.b16 %v320
      %v453 = vunpack.c.l.b16 %v321
      %v454 = vunpack.c.l.b16 %v322
      %v455 = vunpack.c.l.b16 %v323
      %v456 = vunpack.c.l.b16 %v324
      %v457 = vunpack.c.l.b16 %v325
      %v458 = vunpack.c.l.b16 %v326
      %v459 = vunpack.c.l.b16 %v327
      %v460 = vunpack.c.l.b16 %v328
      %v461 = vunpack.c.l.b16 %v329
      %v462 = vunpack.c.l.b16 %v330
      %v463 = vunpack.c.l.b16 %v331
      %v464 = vunpack.c.l.b16 %v332
      %v465 = vunpack.c.l.b16 %v333
      %v466 = vunpack.c.l.b16 %v334
      %v467 = vunpack.c.l.b16 %v335
      %v468 = vunpack.c.l.b16 %v336
      %v469 = vunpack.c.l.b16 %v337
      %v470 = vunpack.c.l.b16 %v338
      %v471 = vunpack.c.l.b16 %v339
      %v472 = vunpack.c.l.b16 %v340
      %v473 = vunpack.c.l.b16 %v341
      %v474 = vunpack.c.l.b16 %v342
      %v475 = vunpack.c.l.b16 %v343
      %v476 = vunpack.c.l.b16 %v344
      %v477 = vunpack.c.l.b16 %v345
      %v478 = vpack.c.b16 %v415, %v414
      %v479 = vpack.c.b16 %v417, %v416
      %v480 = vpack.c.b16 %v419, %v418
      %v481 = vpack.c.b16 %v421, %v420
      %v482 = vpack.c.b16 %v423, %v422
      %v483 = vpack.c.b16 %v425, %v424
      %v484 = vpack.c.b16 %v427, %v426
      %v485 = vpack.c.b16 %v429, %v428
      %v486 = vpack.c.b16 %v431, %v430
      %v487 = vpack.c.b16 %v433, %v432
      %v488 = vpack.c.b16 %v435, %v434
      %v489 = vpack.c.b16 %v437, %v436
      %v490 = vpack.c.b16 %v439, %v438
      %v491 = vpack.c.b16 %v441, %v440
      %v492 = vpack.c.b16 %v443, %v442
      %v493 = vpack.c.b16 %v445, %v444
      %v494 = vpack.c.b16 %v447, %v446
      %v495 = vpack.c.b16 %v449, %v448
      %v496 = vpack.c.b16 %v451, %v450
      %v497 = vpack.c.b16 %v453, %v452
      %v498 = vpack.c.b16 %v455, %v454
      %v499 = vpack.c.b16 %v457, %v456
      %v500 = vpack.c.b16 %v459, %v458
      %v501 = vpack.c.b16 %v461, %v460
      %v502 = vpack.c.b16 %v463, %v462
      %v503 = vpack.c.b16 %v465, %v464
      %v504 = vpack.c.b16 %v467, %v466
      %v505 = vpack.c.b16 %v469, %v468
      %v506 = vpack.c.b16 %v471, %v470
      %v507 = vpack.c.b16 %v473, %v472
      %v508 = vpack.c.b16 %v475, %v474
      %v509 = vpack.c.b16 %v477, %v476
      %v514 = vunpack.c.l.b16 %v346
      %v515 = vunpack.c.l.b16 %v347
      %v516 = vunpack.c.l.b16 %v348
      %v517 = vunpack.c.l.b16 %v349
      %v518 = vpack.c.b16 %v515, %v514
      %v519 = vpack.c.b16 %v517, %v516
      %v520 = vld [vmem:[%s268] sm:$0x3]
      %s521 = scalar_lea.vmem %s268, 2
      %v522 = vld [vmem:[%s521] sm:$0x3]
      %vm523 = vsmask.f32 7424
      %v525 = vshrl.u32 %v478, 16
      %v527 = vshll.u32 %v478, 16
      %v529 = vrot.slane %v527, 1
      %v530 = vor.u32 %v525, %v529
      %v532 = vshll.u32 %v479, 16
      %v534 = vrot.slane %v532, 1
      %v535 = vsel %vm523, %v530, %v534
      %v536 = vshrl.u32 %v479, 16
      %v538 = vor.u32 %v536, %v534
      %v540 = vshll.u32 %v480, 16
      %v542 = vrot.slane %v540, 1
      %v543 = vsel %vm523, %v538, %v542
      %v544 = vshrl.u32 %v480, 16
      %v546 = vor.u32 %v544, %v542
      %v548 = vshll.u32 %v481, 16
      %v550 = vrot.slane %v548, 1
      %v551 = vsel %vm523, %v546, %v550
      %v552 = vshrl.u32 %v481, 16
      %v554 = vor.u32 %v552, %v550
      %v556 = vshll.u32 %v482, 16
      %v558 = vrot.slane %v556, 1
      %v559 = vsel %vm523, %v554, %v558
      %v560 = vshrl.u32 %v482, 16
      %v562 = vor.u32 %v560, %v558
      %v564 = vshll.u32 %v483, 16
      %v566 = vrot.slane %v564, 1
      %v567 = vsel %vm523, %v562, %v566
      %v568 = vshrl.u32 %v483, 16
      %v570 = vor.u32 %v568, %v566
      %v572 = vshll.u32 %v484, 16
      %v574 = vrot.slane %v572, 1
      %v575 = vsel %vm523, %v570, %v574
      %v576 = vshrl.u32 %v484, 16
      %v578 = vor.u32 %v576, %v574
      %v580 = vshll.u32 %v485, 16
      %v582 = vrot.slane %v580, 1
      %v583 = vsel %vm523, %v578, %v582
      %v584 = vshrl.u32 %v485, 16
      %v586 = vor.u32 %v584, %v582
      %v588 = vshll.u32 %v486, 16
      %v590 = vrot.slane %v588, 1
      %v591 = vsel %vm523, %v586, %v590
      %v592 = vshrl.u32 %v486, 16
      %v594 = vor.u32 %v592, %v590
      %v596 = vshll.u32 %v487, 16
      %v598 = vrot.slane %v596, 1
      %v599 = vsel %vm523, %v594, %v598
      %v600 = vshrl.u32 %v487, 16
      %v602 = vor.u32 %v600, %v598
      %v604 = vshll.u32 %v488, 16
      %v606 = vrot.slane %v604, 1
      %v607 = vsel %vm523, %v602, %v606
      %v608 = vshrl.u32 %v488, 16
      %v610 = vor.u32 %v608, %v606
      %v612 = vshll.u32 %v489, 16
      %v614 = vrot.slane %v612, 1
      %v615 = vsel %vm523, %v610, %v614
      %v616 = vshrl.u32 %v489, 16
      %v618 = vor.u32 %v616, %v614
      %v620 = vshll.u32 %v490, 16
      %v622 = vrot.slane %v620, 1
      %v623 = vsel %vm523, %v618, %v622
      %v624 = vshrl.u32 %v490, 16
      %v626 = vor.u32 %v624, %v622
      %v628 = vshll.u32 %v491, 16
      %v630 = vrot.slane %v628, 1
      %v631 = vsel %vm523, %v626, %v630
      %v632 = vshrl.u32 %v491, 16
      %v634 = vor.u32 %v632, %v630
      %v636 = vshll.u32 %v492, 16
      %v638 = vrot.slane %v636, 1
      %v639 = vsel %vm523, %v634, %v638
      %v640 = vshrl.u32 %v492, 16
      %v642 = vor.u32 %v640, %v638
      %v644 = vshll.u32 %v493, 16
      %v646 = vrot.slane %v644, 1
      %v647 = vsel %vm523, %v642, %v646
      %v648 = vshrl.u32 %v493, 16
      %v650 = vor.u32 %v648, %v646
      %v652 = vshll.u32 %v494, 16
      %v654 = vrot.slane %v652, 1
      %v655 = vsel %vm523, %v650, %v654
      %v656 = vshrl.u32 %v494, 16
      %v658 = vor.u32 %v656, %v654
      %v660 = vshll.u32 %v495, 16
      %v662 = vrot.slane %v660, 1
      %v663 = vsel %vm523, %v658, %v662
      %v664 = vshrl.u32 %v495, 16
      %v666 = vor.u32 %v664, %v662
      %v668 = vshll.u32 %v496, 16
      %v670 = vrot.slane %v668, 1
      %v671 = vsel %vm523, %v666, %v670
      %v672 = vshrl.u32 %v496, 16
      %v674 = vor.u32 %v672, %v670
      %v676 = vshll.u32 %v497, 16
      %v678 = vrot.slane %v676, 1
      %v679 = vsel %vm523, %v674, %v678
      %v680 = vshrl.u32 %v497, 16
      %v682 = vor.u32 %v680, %v678
      %v684 = vshll.u32 %v498, 16
      %v686 = vrot.slane %v684, 1
      %v687 = vsel %vm523, %v682, %v686
      %v688 = vshrl.u32 %v498, 16
      %v690 = vor.u32 %v688, %v686
      %v692 = vshll.u32 %v499, 16
      %v694 = vrot.slane %v692, 1
      %v695 = vsel %vm523, %v690, %v694
      %v696 = vshrl.u32 %v499, 16
      %v698 = vor.u32 %v696, %v694
      %v700 = vshll.u32 %v500, 16
      %v702 = vrot.slane %v700, 1
      %v703 = vsel %vm523, %v698, %v702
      %v704 = vshrl.u32 %v500, 16
      %v706 = vor.u32 %v704, %v702
      %v708 = vshll.u32 %v501, 16
      %v710 = vrot.slane %v708, 1
      %v711 = vsel %vm523, %v706, %v710
      %v712 = vshrl.u32 %v501, 16
      %v714 = vor.u32 %v712, %v710
      %v716 = vshll.u32 %v502, 16
      %v718 = vrot.slane %v716, 1
      %v719 = vsel %vm523, %v714, %v718
      %v720 = vshrl.u32 %v502, 16
      %v722 = vor.u32 %v720, %v718
      %v724 = vshll.u32 %v503, 16
      %v726 = vrot.slane %v724, 1
      %v727 = vsel %vm523, %v722, %v726
      %v728 = vshrl.u32 %v503, 16
      %v730 = vor.u32 %v728, %v726
      %v732 = vshll.u32 %v504, 16
      %v734 = vrot.slane %v732, 1
      %v735 = vsel %vm523, %v730, %v734
      %v736 = vshrl.u32 %v504, 16
      %v738 = vor.u32 %v736, %v734
      %v740 = vshll.u32 %v505, 16
      %v742 = vrot.slane %v740, 1
      %v743 = vsel %vm523, %v738, %v742
      %v744 = vshrl.u32 %v505, 16
      %v746 = vor.u32 %v744, %v742
      %v748 = vshll.u32 %v506, 16
      %v750 = vrot.slane %v748, 1
      %v751 = vsel %vm523, %v746, %v750
      %v752 = vshrl.u32 %v506, 16
      %v754 = vor.u32 %v752, %v750
      %v756 = vshll.u32 %v507, 16
      %v758 = vrot.slane %v756, 1
      %v759 = vsel %vm523, %v754, %v758
      %v760 = vshrl.u32 %v507, 16
      %v762 = vor.u32 %v760, %v758
      %v764 = vshll.u32 %v508, 16
      %v766 = vrot.slane %v764, 1
      %v767 = vsel %vm523, %v762, %v766
      %v768 = vshrl.u32 %v508, 16
      %v770 = vor.u32 %v768, %v766
      %v772 = vshll.u32 %v509, 16
      %v774 = vrot.slane %v772, 1
      %v775 = vsel %vm523, %v770, %v774
      %v776 = vshrl.u32 %v509, 16
      %v778 = vor.u32 %v776, %v774
      %v780 = vshll.u32 %v518, 16
      %v782 = vrot.slane %v780, 1
      %v783 = vsel %vm523, %v778, %v782
      %vm784 = vcmask 31744
      %v786 = vsel %vm784, %v535, 0
      %v789 = vsel %vm784, %v543, 0
      %v792 = vsel %vm784, %v551, 0
      %v795 = vsel %vm784, %v559, 0
      %v798 = vsel %vm784, %v567, 0
      %v801 = vsel %vm784, %v575, 0
      %v804 = vsel %vm784, %v583, 0
      %v807 = vsel %vm784, %v591, 0
      %v810 = vsel %vm784, %v599, 0
      %v813 = vsel %vm784, %v607, 0
      %v816 = vsel %vm784, %v615, 0
      %v819 = vsel %vm784, %v623, 0
      %v822 = vsel %vm784, %v631, 0
      %v825 = vsel %vm784, %v639, 0
      %v828 = vsel %vm784, %v647, 0
      %v831 = vsel %vm784, %v655, 0
      %v834 = vsel %vm784, %v663, 0
      %v837 = vsel %vm784, %v671, 0
      %v840 = vsel %vm784, %v679, 0
      %v843 = vsel %vm784, %v687, 0
      %v846 = vsel %vm784, %v695, 0
      %v849 = vsel %vm784, %v703, 0
      %v852 = vsel %vm784, %v711, 0
      %v855 = vsel %vm784, %v719, 0
      %v858 = vsel %vm784, %v727, 0
      %v861 = vsel %vm784, %v735, 0
      %v864 = vsel %vm784, %v743, 0
      %v867 = vsel %vm784, %v751, 0
      %v870 = vsel %vm784, %v759, 0
      %v873 = vsel %vm784, %v767, 0
      %v876 = vsel %vm784, %v775, 0
      %v879 = vsel %vm784, %v783, 0
      %vm881 = vcmask 1041408
      %v883 = vsel %vm881, %v522, 0
      %885 = vmatprep.subr.bf16.mxu0 0
      %886 = vmatpush1.bf16.msra.mxu0 0
      %887 = vmatprep.subr.bf16.mxu0 0
      %888 = vmatpush1.bf16.msra.mxu0 0
      %889 = vmatprep.subr.bf16.mxu0 0
      %890 = vmatpush1.bf16.msra.mxu0 0
      %891 = vmatprep.subr.bf16.mxu0 0
      %892 = vmatpush1.bf16.msra.mxu0 0
      %893 = vmatprep.subr.bf16.mxu0 0
      %894 = vmatpush1.bf16.msra.mxu0 0
      %895 = vmatprep.subr.bf16.mxu0 0
      %896 = vmatpush1.bf16.msra.mxu0 0
      %897 = vmatprep.subr.bf16.mxu0 0
      %898 = vmatpush1.bf16.msra.mxu0 0
      %899 = vmatprep.subr.bf16.mxu0 0
      %900 = vmatpush1.bf16.msra.mxu0 %v883
      %901 = vmatprep.subr.bf16.mxu0 0
      %902 = vmatpush2.bf16.msra.mxu0 0
      %903 = vmatprep.subr.bf16.mxu0 0
      %904 = vmatpush2.bf16.msra.mxu0 0
      %905 = vmatprep.subr.bf16.mxu0 0
      %906 = vmatpush2.bf16.msra.mxu0 0
      %907 = vmatprep.subr.bf16.mxu0 0
      %908 = vmatpush2.bf16.msra.mxu0 0
      %909 = vmatprep.subr.bf16.mxu0 0
      %910 = vmatpush2.bf16.msra.mxu0 0
      %911 = vmatprep.subr.bf16.mxu0 0
      %912 = vmatpush2.bf16.msra.mxu0 0
      %913 = vmatprep.subr.bf16.mxu0 0
      %914 = vmatpush2.bf16.msra.mxu0 0
      %915 = vmatprep.subr.bf16.mxu0 0
      %916 = vmatpush2.bf16.msra.mxu0 0
      %917 = vmatprep.mubr.bf16.mxu0 0
      %918 = vmatmul.mubr.bf16.gmra.mxu0 %v786
      %v919 = vpop.f32.mrf.mxu0
      %v920 = vadd.f32 0.0, %v919
      %v921 = vpop.f32.mrf.mxu0
      %v922 = vpop.f32.mrf.mxu0
      %v923 = vadd.f32 0.0, %v922
      %v924 = vpop.f32.mrf.mxu0
      %925 = vmatprep.mubr.bf16.mxu0 0
      %926 = vmatmul.mubr.bf16.gmra.mxu0 %v789
      %v927 = vpop.f32.mrf.mxu0
      %v928 = vadd.f32 0.0, %v927
      %v929 = vpop.f32.mrf.mxu0
      %v930 = vpop.f32.mrf.mxu0
      %v931 = vadd.f32 0.0, %v930
      %v932 = vpop.f32.mrf.mxu0
      %933 = vmatprep.mubr.bf16.mxu0 0
      %934 = vmatmul.mubr.bf16.gmra.mxu0 %v792
      %v935 = vpop.f32.mrf.mxu0
      %v936 = vadd.f32 0.0, %v935
      %v937 = vpop.f32.mrf.mxu0
      %v938 = vpop.f32.mrf.mxu0
      %v939 = vadd.f32 0.0, %v938
      %v940 = vpop.f32.mrf.mxu0
      %941 = vmatprep.mubr.bf16.mxu0 0
      %942 = vmatmul.mubr.bf16.gmra.mxu0 %v795
      %v943 = vpop.f32.mrf.mxu0
      %v944 = vadd.f32 0.0, %v943
      %v945 = vpop.f32.mrf.mxu0
      %v946 = vpop.f32.mrf.mxu0
      %v947 = vadd.f32 0.0, %v946
      %v948 = vpop.f32.mrf.mxu0
      %949 = vmatprep.mubr.bf16.mxu0 0
      %950 = vmatmul.mubr.bf16.gmra.mxu0 %v798
      %v951 = vpop.f32.mrf.mxu0
      %v952 = vadd.f32 0.0, %v951
      %v953 = vpop.f32.mrf.mxu0
      %v954 = vpop.f32.mrf.mxu0
      %v955 = vadd.f32 0.0, %v954
      %v956 = vpop.f32.mrf.mxu0
      %957 = vmatprep.mubr.bf16.mxu0 0
      %958 = vmatmul.mubr.bf16.gmra.mxu0 %v801
      %v959 = vpop.f32.mrf.mxu0
      %v960 = vadd.f32 0.0, %v959
      %v961 = vpop.f32.mrf.mxu0
      %v962 = vpop.f32.mrf.mxu0
      %v963 = vadd.f32 0.0, %v962
      %v964 = vpop.f32.mrf.mxu0
      %965 = vmatprep.mubr.bf16.mxu0 0
      %966 = vmatmul.mubr.bf16.gmra.mxu0 %v804
      %v967 = vpop.f32.mrf.mxu0
      %v968 = vadd.f32 0.0, %v967
      %v969 = vpop.f32.mrf.mxu0
      %v970 = vpop.f32.mrf.mxu0
      %v971 = vadd.f32 0.0, %v970
      %v972 = vpop.f32.mrf.mxu0
      %973 = vmatprep.mubr.bf16.mxu0 0
      %974 = vmatmul.mubr.bf16.gmra.mxu0 %v807
      %v975 = vpop.f32.mrf.mxu0
      %v976 = vadd.f32 0.0, %v975
      %v977 = vpop.f32.mrf.mxu0
      %v978 = vpop.f32.mrf.mxu0
      %v979 = vadd.f32 0.0, %v978
      %v980 = vpop.f32.mrf.mxu0
      %981 = vmatprep.mubr.bf16.mxu0 0
      %982 = vmatmul.mubr.bf16.gmra.mxu0 %v810
      %v983 = vpop.f32.mrf.mxu0
      %v984 = vadd.f32 0.0, %v983
      %v985 = vpop.f32.mrf.mxu0
      %v986 = vpop.f32.mrf.mxu0
      %v987 = vadd.f32 0.0, %v986
      %v988 = vpop.f32.mrf.mxu0
      %989 = vmatprep.mubr.bf16.mxu0 0
      %990 = vmatmul.mubr.bf16.gmra.mxu0 %v813
      %v991 = vpop.f32.mrf.mxu0
      %v992 = vadd.f32 0.0, %v991
      %v993 = vpop.f32.mrf.mxu0
      %v994 = vpop.f32.mrf.mxu0
      %v995 = vadd.f32 0.0, %v994
      %v996 = vpop.f32.mrf.mxu0
      %997 = vmatprep.mubr.bf16.mxu0 0
      %998 = vmatmul.mubr.bf16.gmra.mxu0 %v816
      %v999 = vpop.f32.mrf.mxu0
      %v1000 = vadd.f32 0.0, %v999
      %v1001 = vpop.f32.mrf.mxu0
      %v1002 = vpop.f32.mrf.mxu0
      %v1003 = vadd.f32 0.0, %v1002
      %v1004 = vpop.f32.mrf.mxu0
      %1005 = vmatprep.mubr.bf16.mxu0 0
      %1006 = vmatmul.mubr.bf16.gmra.mxu0 %v819
      %v1007 = vpop.f32.mrf.mxu0
      %v1008 = vadd.f32 0.0, %v1007
      %v1009 = vpop.f32.mrf.mxu0
      %v1010 = vpop.f32.mrf.mxu0
      %v1011 = vadd.f32 0.0, %v1010
      %v1012 = vpop.f32.mrf.mxu0
      %1013 = vmatprep.mubr.bf16.mxu0 0
      %1014 = vmatmul.mubr.bf16.gmra.mxu0 %v822
      %v1015 = vpop.f32.mrf.mxu0
      %v1016 = vadd.f32 0.0, %v1015
      %v1017 = vpop.f32.mrf.mxu0
      %v1018 = vpop.f32.mrf.mxu0
      %v1019 = vadd.f32 0.0, %v1018
      %v1020 = vpop.f32.mrf.mxu0
      %1021 = vmatprep.mubr.bf16.mxu0 0
      %1022 = vmatmul.mubr.bf16.gmra.mxu0 %v825
      %v1023 = vpop.f32.mrf.mxu0
      %v1024 = vadd.f32 0.0, %v1023
      %v1025 = vpop.f32.mrf.mxu0
      %v1026 = vpop.f32.mrf.mxu0
      %v1027 = vadd.f32 0.0, %v1026
      %v1028 = vpop.f32.mrf.mxu0
      %1029 = vmatprep.mubr.bf16.mxu0 0
      %1030 = vmatmul.mubr.bf16.gmra.mxu0 %v828
      %v1031 = vpop.f32.mrf.mxu0
      %v1032 = vadd.f32 0.0, %v1031
      %v1033 = vpop.f32.mrf.mxu0
      %v1034 = vpop.f32.mrf.mxu0
      %v1035 = vadd.f32 0.0, %v1034
      %v1036 = vpop.f32.mrf.mxu0
      %1037 = vmatprep.mubr.bf16.mxu0 0
      %1038 = vmatmul.mubr.bf16.gmra.mxu0 %v831
      %v1039 = vpop.f32.mrf.mxu0
      %v1040 = vadd.f32 0.0, %v1039
      %v1041 = vpop.f32.mrf.mxu0
      %v1042 = vpop.f32.mrf.mxu0
      %v1043 = vadd.f32 0.0, %v1042
      %v1044 = vpop.f32.mrf.mxu0
      %1045 = vmatprep.mubr.bf16.mxu0 0
      %1046 = vmatmul.mubr.bf16.gmra.mxu0 %v834
      %v1047 = vpop.f32.mrf.mxu0
      %v1048 = vadd.f32 0.0, %v1047
      %v1049 = vpop.f32.mrf.mxu0
      %v1050 = vpop.f32.mrf.mxu0
      %v1051 = vadd.f32 0.0, %v1050
      %v1052 = vpop.f32.mrf.mxu0
      %1053 = vmatprep.mubr.bf16.mxu0 0
      %1054 = vmatmul.mubr.bf16.gmra.mxu0 %v837
      %v1055 = vpop.f32.mrf.mxu0
      %v1056 = vadd.f32 0.0, %v1055
      %v1057 = vpop.f32.mrf.mxu0
      %v1058 = vpop.f32.mrf.mxu0
      %v1059 = vadd.f32 0.0, %v1058
      %v1060 = vpop.f32.mrf.mxu0
      %1061 = vmatprep.mubr.bf16.mxu0 0
      %1062 = vmatmul.mubr.bf16.gmra.mxu0 %v840
      %v1063 = vpop.f32.mrf.mxu0
      %v1064 = vadd.f32 0.0, %v1063
      %v1065 = vpop.f32.mrf.mxu0
      %v1066 = vpop.f32.mrf.mxu0
      %v1067 = vadd.f32 0.0, %v1066
      %v1068 = vpop.f32.mrf.mxu0
      %1069 = vmatprep.mubr.bf16.mxu0 0
      %1070 = vmatmul.mubr.bf16.gmra.mxu0 %v843
      %v1071 = vpop.f32.mrf.mxu0
      %v1072 = vadd.f32 0.0, %v1071
      %v1073 = vpop.f32.mrf.mxu0
      %v1074 = vpop.f32.mrf.mxu0
      %v1075 = vadd.f32 0.0, %v1074
      %v1076 = vpop.f32.mrf.mxu0
      %1077 = vmatprep.mubr.bf16.mxu0 0
      %1078 = vmatmul.mubr.bf16.gmra.mxu0 %v846
      %v1079 = vpop.f32.mrf.mxu0
      %v1080 = vadd.f32 0.0, %v1079
      %v1081 = vpop.f32.mrf.mxu0
      %v1082 = vpop.f32.mrf.mxu0
      %v1083 = vadd.f32 0.0, %v1082
      %v1084 = vpop.f32.mrf.mxu0
      %1085 = vmatprep.mubr.bf16.mxu0 0
      %1086 = vmatmul.mubr.bf16.gmra.mxu0 %v849
      %v1087 = vpop.f32.mrf.mxu0
      %v1088 = vadd.f32 0.0, %v1087
      %v1089 = vpop.f32.mrf.mxu0
      %v1090 = vpop.f32.mrf.mxu0
      %v1091 = vadd.f32 0.0, %v1090
      %v1092 = vpop.f32.mrf.mxu0
      %1093 = vmatprep.mubr.bf16.mxu0 0
      %1094 = vmatmul.mubr.bf16.gmra.mxu0 %v852
      %v1095 = vpop.f32.mrf.mxu0
      %v1096 = vadd.f32 0.0, %v1095
      %v1097 = vpop.f32.mrf.mxu0
      %v1098 = vpop.f32.mrf.mxu0
      %v1099 = vadd.f32 0.0, %v1098
      %v1100 = vpop.f32.mrf.mxu0
      %1101 = vmatprep.mubr.bf16.mxu0 0
      %1102 = vmatmul.mubr.bf16.gmra.mxu0 %v855
      %v1103 = vpop.f32.mrf.mxu0
      %v1104 = vadd.f32 0.0, %v1103
      %v1105 = vpop.f32.mrf.mxu0
      %v1106 = vpop.f32.mrf.mxu0
      %v1107 = vadd.f32 0.0, %v1106
      %v1108 = vpop.f32.mrf.mxu0
      %1109 = vmatprep.mubr.bf16.mxu0 0
      %1110 = vmatmul.mubr.bf16.gmra.mxu0 %v858
      %v1111 = vpop.f32.mrf.mxu0
      %v1112 = vadd.f32 0.0, %v1111
      %v1113 = vpop.f32.mrf.mxu0
      %v1114 = vpop.f32.mrf.mxu0
      %v1115 = vadd.f32 0.0, %v1114
      %v1116 = vpop.f32.mrf.mxu0
      %1117 = vmatprep.mubr.bf16.mxu0 0
      %1118 = vmatmul.mubr.bf16.gmra.mxu0 %v861
      %v1119 = vpop.f32.mrf.mxu0
      %v1120 = vadd.f32 0.0, %v1119
      %v1121 = vpop.f32.mrf.mxu0
      %v1122 = vpop.f32.mrf.mxu0
      %v1123 = vadd.f32 0.0, %v1122
      %v1124 = vpop.f32.mrf.mxu0
      %1125 = vmatprep.mubr.bf16.mxu0 0
      %1126 = vmatmul.mubr.bf16.gmra.mxu0 %v864
      %v1127 = vpop.f32.mrf.mxu0
      %v1128 = vadd.f32 0.0, %v1127
      %v1129 = vpop.f32.mrf.mxu0
      %v1130 = vpop.f32.mrf.mxu0
      %v1131 = vadd.f32 0.0, %v1130
      %v1132 = vpop.f32.mrf.mxu0
      %1133 = vmatprep.mubr.bf16.mxu0 0
      %1134 = vmatmul.mubr.bf16.gmra.mxu0 %v867
      %v1135 = vpop.f32.mrf.mxu0
      %v1136 = vadd.f32 0.0, %v1135
      %v1137 = vpop.f32.mrf.mxu0
      %v1138 = vpop.f32.mrf.mxu0
      %v1139 = vadd.f32 0.0, %v1138
      %v1140 = vpop.f32.mrf.mxu0
      %1141 = vmatprep.mubr.bf16.mxu0 0
      %1142 = vmatmul.mubr.bf16.gmra.mxu0 %v870
      %v1143 = vpop.f32.mrf.mxu0
      %v1144 = vadd.f32 0.0, %v1143
      %v1145 = vpop.f32.mrf.mxu0
      %v1146 = vpop.f32.mrf.mxu0
      %v1147 = vadd.f32 0.0, %v1146
      %v1148 = vpop.f32.mrf.mxu0
      %1149 = vmatprep.mubr.bf16.mxu0 0
      %1150 = vmatmul.mubr.bf16.gmra.mxu0 %v873
      %v1151 = vpop.f32.mrf.mxu0
      %v1152 = vadd.f32 0.0, %v1151
      %v1153 = vpop.f32.mrf.mxu0
      %v1154 = vpop.f32.mrf.mxu0
      %v1155 = vadd.f32 0.0, %v1154
      %v1156 = vpop.f32.mrf.mxu0
      %1157 = vmatprep.mubr.bf16.mxu0 0
      %1158 = vmatmul.mubr.bf16.gmra.mxu0 %v876
      %v1159 = vpop.f32.mrf.mxu0
      %v1160 = vadd.f32 0.0, %v1159
      %v1161 = vpop.f32.mrf.mxu0
      %v1162 = vpop.f32.mrf.mxu0
      %v1163 = vadd.f32 0.0, %v1162
      %v1164 = vpop.f32.mrf.mxu0
      %1165 = vmatprep.mubr.bf16.mxu0 0
      %1166 = vmatmul.mubr.bf16.gmra.mxu0 %v879
      %v1167 = vpop.f32.mrf.mxu0
      %v1168 = vadd.f32 0.0, %v1167
      %v1169 = vpop.f32.mrf.mxu0
      %v1170 = vpop.f32.mrf.mxu0
      %v1171 = vadd.f32 0.0, %v1170
      %v1172 = vpop.f32.mrf.mxu0
      %1173 = vdwg.mxu0
      %v1174 = vsel %vm784, %v478, 0
      %v1176 = vsel %vm784, %v479, 0
      %v1178 = vsel %vm784, %v480, 0
      %v1180 = vsel %vm784, %v481, 0
      %v1182 = vsel %vm784, %v482, 0
      %v1184 = vsel %vm784, %v483, 0
      %v1186 = vsel %vm784, %v484, 0
      %v1188 = vsel %vm784, %v485, 0
      %v1190 = vsel %vm784, %v486, 0
      %v1192 = vsel %vm784, %v487, 0
      %v1194 = vsel %vm784, %v488, 0
      %v1196 = vsel %vm784, %v489, 0
      %v1198 = vsel %vm784, %v490, 0
      %v1200 = vsel %vm784, %v491, 0
      %v1202 = vsel %vm784, %v492, 0
      %v1204 = vsel %vm784, %v493, 0
      %v1206 = vsel %vm784, %v494, 0
      %v1208 = vsel %vm784, %v495, 0
      %v1210 = vsel %vm784, %v496, 0
      %v1212 = vsel %vm784, %v497, 0
      %v1214 = vsel %vm784, %v498, 0
      %v1216 = vsel %vm784, %v499, 0
      %v1218 = vsel %vm784, %v500, 0
      %v1220 = vsel %vm784, %v501, 0
      %v1222 = vsel %vm784, %v502, 0
      %v1224 = vsel %vm784, %v503, 0
      %v1226 = vsel %vm784, %v504, 0
      %v1228 = vsel %vm784, %v505, 0
      %v1230 = vsel %vm784, %v506, 0
      %v1232 = vsel %vm784, %v507, 0
      %v1234 = vsel %vm784, %v508, 0
      %v1236 = vsel %vm784, %v509, 0
      %v1239 = vsel %vm881, %v520, 0
      %1241 = vmatprep.subr.bf16.mxu0 0
      %1242 = vmatpush1.bf16.msra.mxu0 0
      %1243 = vmatprep.subr.bf16.mxu0 0
      %1244 = vmatpush1.bf16.msra.mxu0 0
      %1245 = vmatprep.subr.bf16.mxu0 0
      %1246 = vmatpush1.bf16.msra.mxu0 0
      %1247 = vmatprep.subr.bf16.mxu0 0
      %1248 = vmatpush1.bf16.msra.mxu0 0
      %1249 = vmatprep.subr.bf16.mxu0 0
      %1250 = vmatpush1.bf16.msra.mxu0 0
      %1251 = vmatprep.subr.bf16.mxu0 0
      %1252 = vmatpush1.bf16.msra.mxu0 0
      %1253 = vmatprep.subr.bf16.mxu0 0
      %1254 = vmatpush1.bf16.msra.mxu0 0
      %1255 = vmatprep.subr.bf16.mxu0 0
      %1256 = vmatpush1.bf16.msra.mxu0 %v1239
      %1257 = vmatprep.subr.bf16.mxu0 0
      %1258 = vmatpush2.bf16.msra.mxu0 0
      %1259 = vmatprep.subr.bf16.mxu0 0
      %1260 = vmatpush2.bf16.msra.mxu0 0
      %1261 = vmatprep.subr.bf16.mxu0 0
      %1262 = vmatpush2.bf16.msra.mxu0 0
      %1263 = vmatprep.subr.bf16.mxu0 0
      %1264 = vmatpush2.bf16.msra.mxu0 0
      %1265 = vmatprep.subr.bf16.mxu0 0
      %1266 = vmatpush2.bf16.msra.mxu0 0
      %1267 = vmatprep.subr.bf16.mxu0 0
      %1268 = vmatpush2.bf16.msra.mxu0 0
      %1269 = vmatprep.subr.bf16.mxu0 0
      %1270 = vmatpush2.bf16.msra.mxu0 0
      %1271 = vmatprep.subr.bf16.mxu0 0
      %1272 = vmatpush2.bf16.msra.mxu0 0
      %1273 = vmatprep.mubr.bf16.mxu0 0
      %1274 = vmatmul.mubr.bf16.gmra.mxu0 %v1174
      %v1275 = vpop.f32.mrf.mxu0
      %v1276 = vadd.f32 %v920, %v1275
      %v1277 = vpop.f32.mrf.mxu0
      %v1278 = vpop.f32.mrf.mxu0
      %v1279 = vadd.f32 %v923, %v1278
      %v1280 = vpop.f32.mrf.mxu0
      %1281 = vmatprep.mubr.bf16.mxu0 0
      %1282 = vmatmul.mubr.bf16.gmra.mxu0 %v1176
      %v1283 = vpop.f32.mrf.mxu0
      %v1284 = vadd.f32 %v928, %v1283
      %v1285 = vpop.f32.mrf.mxu0
      %v1286 = vpop.f32.mrf.mxu0
      %v1287 = vadd.f32 %v931, %v1286
      %v1288 = vpop.f32.mrf.mxu0
      %1289 = vmatprep.mubr.bf16.mxu0 0
      %1290 = vmatmul.mubr.bf16.gmra.mxu0 %v1178
      %v1291 = vpop.f32.mrf.mxu0
      %v1292 = vadd.f32 %v936, %v1291
      %v1293 = vpop.f32.mrf.mxu0
      %v1294 = vpop.f32.mrf.mxu0
      %v1295 = vadd.f32 %v939, %v1294
      %v1296 = vpop.f32.mrf.mxu0
      %1297 = vmatprep.mubr.bf16.mxu0 0
      %1298 = vmatmul.mubr.bf16.gmra.mxu0 %v1180
      %v1299 = vpop.f32.mrf.mxu0
      %v1300 = vadd.f32 %v944, %v1299
      %v1301 = vpop.f32.mrf.mxu0
      %v1302 = vpop.f32.mrf.mxu0
      %v1303 = vadd.f32 %v947, %v1302
      %v1304 = vpop.f32.mrf.mxu0
      %1305 = vmatprep.mubr.bf16.mxu0 0
      %1306 = vmatmul.mubr.bf16.gmra.mxu0 %v1182
      %v1307 = vpop.f32.mrf.mxu0
      %v1308 = vadd.f32 %v952, %v1307
      %v1309 = vpop.f32.mrf.mxu0
      %v1310 = vpop.f32.mrf.mxu0
      %v1311 = vadd.f32 %v955, %v1310
      %v1312 = vpop.f32.mrf.mxu0
      %1313 = vmatprep.mubr.bf16.mxu0 0
      %1314 = vmatmul.mubr.bf16.gmra.mxu0 %v1184
      %v1315 = vpop.f32.mrf.mxu0
      %v1316 = vadd.f32 %v960, %v1315
      %v1317 = vpop.f32.mrf.mxu0
      %v1318 = vpop.f32.mrf.mxu0
      %v1319 = vadd.f32 %v963, %v1318
      %v1320 = vpop.f32.mrf.mxu0
      %1321 = vmatprep.mubr.bf16.mxu0 0
      %1322 = vmatmul.mubr.bf16.gmra.mxu0 %v1186
      %v1323 = vpop.f32.mrf.mxu0
      %v1324 = vadd.f32 %v968, %v1323
      %v1325 = vpop.f32.mrf.mxu0
      %v1326 = vpop.f32.mrf.mxu0
      %v1327 = vadd.f32 %v971, %v1326
      %v1328 = vpop.f32.mrf.mxu0
      %1329 = vmatprep.mubr.bf16.mxu0 0
      %1330 = vmatmul.mubr.bf16.gmra.mxu0 %v1188
      %v1331 = vpop.f32.mrf.mxu0
      %v1332 = vadd.f32 %v976, %v1331
      %v1333 = vpop.f32.mrf.mxu0
      %v1334 = vpop.f32.mrf.mxu0
      %v1335 = vadd.f32 %v979, %v1334
      %v1336 = vpop.f32.mrf.mxu0
      %1337 = vmatprep.mubr.bf16.mxu0 0
      %1338 = vmatmul.mubr.bf16.gmra.mxu0 %v1190
      %v1339 = vpop.f32.mrf.mxu0
      %v1340 = vadd.f32 %v984, %v1339
      %v1341 = vpop.f32.mrf.mxu0
      %v1342 = vpop.f32.mrf.mxu0
      %v1343 = vadd.f32 %v987, %v1342
      %v1344 = vpop.f32.mrf.mxu0
      %1345 = vmatprep.mubr.bf16.mxu0 0
      %1346 = vmatmul.mubr.bf16.gmra.mxu0 %v1192
      %v1347 = vpop.f32.mrf.mxu0
      %v1348 = vadd.f32 %v992, %v1347
      %v1349 = vpop.f32.mrf.mxu0
      %v1350 = vpop.f32.mrf.mxu0
      %v1351 = vadd.f32 %v995, %v1350
      %v1352 = vpop.f32.mrf.mxu0
      %1353 = vmatprep.mubr.bf16.mxu0 0
      %1354 = vmatmul.mubr.bf16.gmra.mxu0 %v1194
      %v1355 = vpop.f32.mrf.mxu0
      %v1356 = vadd.f32 %v1000, %v1355
      %v1357 = vpop.f32.mrf.mxu0
      %v1358 = vpop.f32.mrf.mxu0
      %v1359 = vadd.f32 %v1003, %v1358
      %v1360 = vpop.f32.mrf.mxu0
      %1361 = vmatprep.mubr.bf16.mxu0 0
      %1362 = vmatmul.mubr.bf16.gmra.mxu0 %v1196
      %v1363 = vpop.f32.mrf.mxu0
      %v1364 = vadd.f32 %v1008, %v1363
      %v1365 = vpop.f32.mrf.mxu0
      %v1366 = vpop.f32.mrf.mxu0
      %v1367 = vadd.f32 %v1011, %v1366
      %v1368 = vpop.f32.mrf.mxu0
      %1369 = vmatprep.mubr.bf16.mxu0 0
      %1370 = vmatmul.mubr.bf16.gmra.mxu0 %v1198
      %v1371 = vpop.f32.mrf.mxu0
      %v1372 = vadd.f32 %v1016, %v1371
      %v1373 = vpop.f32.mrf.mxu0
      %v1374 = vpop.f32.mrf.mxu0
      %v1375 = vadd.f32 %v1019, %v1374
      %v1376 = vpop.f32.mrf.mxu0
      %1377 = vmatprep.mubr.bf16.mxu0 0
      %1378 = vmatmul.mubr.bf16.gmra.mxu0 %v1200
      %v1379 = vpop.f32.mrf.mxu0
      %v1380 = vadd.f32 %v1024, %v1379
      %v1381 = vpop.f32.mrf.mxu0
      %v1382 = vpop.f32.mrf.mxu0
      %v1383 = vadd.f32 %v1027, %v1382
      %v1384 = vpop.f32.mrf.mxu0
      %1385 = vmatprep.mubr.bf16.mxu0 0
      %1386 = vmatmul.mubr.bf16.gmra.mxu0 %v1202
      %v1387 = vpop.f32.mrf.mxu0
      %v1388 = vadd.f32 %v1032, %v1387
      %v1389 = vpop.f32.mrf.mxu0
      %v1390 = vpop.f32.mrf.mxu0
      %v1391 = vadd.f32 %v1035, %v1390
      %v1392 = vpop.f32.mrf.mxu0
      %1393 = vmatprep.mubr.bf16.mxu0 0
      %1394 = vmatmul.mubr.bf16.gmra.mxu0 %v1204
      %v1395 = vpop.f32.mrf.mxu0
      %v1396 = vadd.f32 %v1040, %v1395
      %v1397 = vpop.f32.mrf.mxu0
      %v1398 = vpop.f32.mrf.mxu0
      %v1399 = vadd.f32 %v1043, %v1398
      %v1400 = vpop.f32.mrf.mxu0
      %1401 = vmatprep.mubr.bf16.mxu0 0
      %1402 = vmatmul.mubr.bf16.gmra.mxu0 %v1206
      %v1403 = vpop.f32.mrf.mxu0
      %v1404 = vadd.f32 %v1048, %v1403
      %v1405 = vpop.f32.mrf.mxu0
      %v1406 = vpop.f32.mrf.mxu0
      %v1407 = vadd.f32 %v1051, %v1406
      %v1408 = vpop.f32.mrf.mxu0
      %1409 = vmatprep.mubr.bf16.mxu0 0
      %1410 = vmatmul.mubr.bf16.gmra.mxu0 %v1208
      %v1411 = vpop.f32.mrf.mxu0
      %v1412 = vadd.f32 %v1056, %v1411
      %v1413 = vpop.f32.mrf.mxu0
      %v1414 = vpop.f32.mrf.mxu0
      %v1415 = vadd.f32 %v1059, %v1414
      %v1416 = vpop.f32.mrf.mxu0
      %1417 = vmatprep.mubr.bf16.mxu0 0
      %1418 = vmatmul.mubr.bf16.gmra.mxu0 %v1210
      %v1419 = vpop.f32.mrf.mxu0
      %v1420 = vadd.f32 %v1064, %v1419
      %v1421 = vpop.f32.mrf.mxu0
      %v1422 = vpop.f32.mrf.mxu0
      %v1423 = vadd.f32 %v1067, %v1422
      %v1424 = vpop.f32.mrf.mxu0
      %1425 = vmatprep.mubr.bf16.mxu0 0
      %1426 = vmatmul.mubr.bf16.gmra.mxu0 %v1212
      %v1427 = vpop.f32.mrf.mxu0
      %v1428 = vadd.f32 %v1072, %v1427
      %v1429 = vpop.f32.mrf.mxu0
      %v1430 = vpop.f32.mrf.mxu0
      %v1431 = vadd.f32 %v1075, %v1430
      %v1432 = vpop.f32.mrf.mxu0
      %1433 = vmatprep.mubr.bf16.mxu0 0
      %1434 = vmatmul.mubr.bf16.gmra.mxu0 %v1214
      %v1435 = vpop.f32.mrf.mxu0
      %v1436 = vadd.f32 %v1080, %v1435
      %v1437 = vpop.f32.mrf.mxu0
      %v1438 = vpop.f32.mrf.mxu0
      %v1439 = vadd.f32 %v1083, %v1438
      %v1440 = vpop.f32.mrf.mxu0
      %1441 = vmatprep.mubr.bf16.mxu0 0
      %1442 = vmatmul.mubr.bf16.gmra.mxu0 %v1216
      %v1443 = vpop.f32.mrf.mxu0
      %v1444 = vadd.f32 %v1088, %v1443
      %v1445 = vpop.f32.mrf.mxu0
      %v1446 = vpop.f32.mrf.mxu0
      %v1447 = vadd.f32 %v1091, %v1446
      %v1448 = vpop.f32.mrf.mxu0
      %1449 = vmatprep.mubr.bf16.mxu0 0
      %1450 = vmatmul.mubr.bf16.gmra.mxu0 %v1218
      %v1451 = vpop.f32.mrf.mxu0
      %v1452 = vadd.f32 %v1096, %v1451
      %v1453 = vpop.f32.mrf.mxu0
      %v1454 = vpop.f32.mrf.mxu0
      %v1455 = vadd.f32 %v1099, %v1454
      %v1456 = vpop.f32.mrf.mxu0
      %1457 = vmatprep.mubr.bf16.mxu0 0
      %1458 = vmatmul.mubr.bf16.gmra.mxu0 %v1220
      %v1459 = vpop.f32.mrf.mxu0
      %v1460 = vadd.f32 %v1104, %v1459
      %v1461 = vpop.f32.mrf.mxu0
      %v1462 = vpop.f32.mrf.mxu0
      %v1463 = vadd.f32 %v1107, %v1462
      %v1464 = vpop.f32.mrf.mxu0
      %1465 = vmatprep.mubr.bf16.mxu0 0
      %1466 = vmatmul.mubr.bf16.gmra.mxu0 %v1222
      %v1467 = vpop.f32.mrf.mxu0
      %v1468 = vadd.f32 %v1112, %v1467
      %v1469 = vpop.f32.mrf.mxu0
      %v1470 = vpop.f32.mrf.mxu0
      %v1471 = vadd.f32 %v1115, %v1470
      %v1472 = vpop.f32.mrf.mxu0
      %1473 = vmatprep.mubr.bf16.mxu0 0
      %1474 = vmatmul.mubr.bf16.gmra.mxu0 %v1224
      %v1475 = vpop.f32.mrf.mxu0
      %v1476 = vadd.f32 %v1120, %v1475
      %v1477 = vpop.f32.mrf.mxu0
      %v1478 = vpop.f32.mrf.mxu0
      %v1479 = vadd.f32 %v1123, %v1478
      %v1480 = vpop.f32.mrf.mxu0
      %1481 = vmatprep.mubr.bf16.mxu0 0
      %1482 = vmatmul.mubr.bf16.gmra.mxu0 %v1226
      %v1483 = vpop.f32.mrf.mxu0
      %v1484 = vadd.f32 %v1128, %v1483
      %v1485 = vpop.f32.mrf.mxu0
      %v1486 = vpop.f32.mrf.mxu0
      %v1487 = vadd.f32 %v1131, %v1486
      %v1488 = vpop.f32.mrf.mxu0
      %1489 = vmatprep.mubr.bf16.mxu0 0
      %1490 = vmatmul.mubr.bf16.gmra.mxu0 %v1228
      %v1491 = vpop.f32.mrf.mxu0
      %v1492 = vadd.f32 %v1136, %v1491
      %v1493 = vpop.f32.mrf.mxu0
      %v1494 = vpop.f32.mrf.mxu0
      %v1495 = vadd.f32 %v1139, %v1494
      %v1496 = vpop.f32.mrf.mxu0
      %1497 = vmatprep.mubr.bf16.mxu0 0
      %1498 = vmatmul.mubr.bf16.gmra.mxu0 %v1230
      %v1499 = vpop.f32.mrf.mxu0
      %v1500 = vadd.f32 %v1144, %v1499
      %v1501 = vpop.f32.mrf.mxu0
      %v1502 = vpop.f32.mrf.mxu0
      %v1503 = vadd.f32 %v1147, %v1502
      %v1504 = vpop.f32.mrf.mxu0
      %1505 = vmatprep.mubr.bf16.mxu0 0
      %1506 = vmatmul.mubr.bf16.gmra.mxu0 %v1232
      %v1507 = vpop.f32.mrf.mxu0
      %v1508 = vadd.f32 %v1152, %v1507
      %v1509 = vpop.f32.mrf.mxu0
      %v1510 = vpop.f32.mrf.mxu0
      %v1511 = vadd.f32 %v1155, %v1510
      %v1512 = vpop.f32.mrf.mxu0
      %1513 = vmatprep.mubr.bf16.mxu0 0
      %1514 = vmatmul.mubr.bf16.gmra.mxu0 %v1234
      %v1515 = vpop.f32.mrf.mxu0
      %v1516 = vadd.f32 %v1160, %v1515
      %v1517 = vpop.f32.mrf.mxu0
      %v1518 = vpop.f32.mrf.mxu0
      %v1519 = vadd.f32 %v1163, %v1518
      %v1520 = vpop.f32.mrf.mxu0
      %1521 = vmatprep.mubr.bf16.mxu0 0
      %1522 = vmatmul.mubr.bf16.gmra.mxu0 %v1236
      %v1523 = vpop.f32.mrf.mxu0
      %v1524 = vadd.f32 %v1168, %v1523
      %v1525 = vpop.f32.mrf.mxu0
      %v1526 = vpop.f32.mrf.mxu0
      %v1527 = vadd.f32 %v1171, %v1526
      %v1528 = vpop.f32.mrf.mxu0
      %1529 = vdwg.mxu0
      %s1530 = scalar_lea.vmem %s268, 4
      %v1531 = vld [vmem:[%s1530] sm:$0x3]
      %vm1532 = vcmask 1046528
      %v1533 = vrot.slane %v479, 1
      %v1534 = vrot.slane %v480, 1
      %v1535 = vsel %vm1532, %v1533, %v1534
      %v1536 = vrot.slane %v481, 1
      %v1537 = vsel %vm1532, %v1534, %v1536
      %v1538 = vrot.slane %v482, 1
      %v1539 = vsel %vm1532, %v1536, %v1538
      %v1540 = vrot.slane %v483, 1
      %v1541 = vsel %vm1532, %v1538, %v1540
      %v1542 = vrot.slane %v484, 1
      %v1543 = vsel %vm1532, %v1540, %v1542
      %v1544 = vrot.slane %v485, 1
      %v1545 = vsel %vm1532, %v1542, %v1544
      %v1546 = vrot.slane %v486, 1
      %v1547 = vsel %vm1532, %v1544, %v1546
      %v1548 = vrot.slane %v487, 1
      %v1549 = vsel %vm1532, %v1546, %v1548
      %v1550 = vrot.slane %v488, 1
      %v1551 = vsel %vm1532, %v1548, %v1550
      %v1552 = vrot.slane %v489, 1
      %v1553 = vsel %vm1532, %v1550, %v1552
      %v1554 = vrot.slane %v490, 1
      %v1555 = vsel %vm1532, %v1552, %v1554
      %v1556 = vrot.slane %v491, 1
      %v1557 = vsel %vm1532, %v1554, %v1556
      %v1558 = vrot.slane %v492, 1
      %v1559 = vsel %vm1532, %v1556, %v1558
      %v1560 = vrot.slane %v493, 1
      %v1561 = vsel %vm1532, %v1558, %v1560
      %v1562 = vrot.slane %v494, 1
      %v1563 = vsel %vm1532, %v1560, %v1562
      %v1564 = vrot.slane %v495, 1
      %v1565 = vsel %vm1532, %v1562, %v1564
      %v1566 = vrot.slane %v496, 1
      %v1567 = vsel %vm1532, %v1564, %v1566
      %v1568 = vrot.slane %v497, 1
      %v1569 = vsel %vm1532, %v1566, %v1568
      %v1570 = vrot.slane %v498, 1
      %v1571 = vsel %vm1532, %v1568, %v1570
      %v1572 = vrot.slane %v499, 1
      %v1573 = vsel %vm1532, %v1570, %v1572
      %v1574 = vrot.slane %v500, 1
      %v1575 = vsel %vm1532, %v1572, %v1574
      %v1576 = vrot.slane %v501, 1
      %v1577 = vsel %vm1532, %v1574, %v1576
      %v1578 = vrot.slane %v502, 1
      %v1579 = vsel %vm1532, %v1576, %v1578
      %v1580 = vrot.slane %v503, 1
      %v1581 = vsel %vm1532, %v1578, %v1580
      %v1582 = vrot.slane %v504, 1
      %v1583 = vsel %vm1532, %v1580, %v1582
      %v1584 = vrot.slane %v505, 1
      %v1585 = vsel %vm1532, %v1582, %v1584
      %v1586 = vrot.slane %v506, 1
      %v1587 = vsel %vm1532, %v1584, %v1586
      %v1588 = vrot.slane %v507, 1
      %v1589 = vsel %vm1532, %v1586, %v1588
      %v1590 = vrot.slane %v508, 1
      %v1591 = vsel %vm1532, %v1588, %v1590
      %v1592 = vrot.slane %v509, 1
      %v1593 = vsel %vm1532, %v1590, %v1592
      %v1594 = vrot.slane %v518, 1
      %v1595 = vsel %vm1532, %v1592, %v1594
      %v1596 = vrot.slane %v519, 1
      %v1597 = vsel %vm1532, %v1594, %v1596
      %v1599 = vsel %vm784, %v1535, 0
      %v1602 = vsel %vm784, %v1537, 0
      %v1605 = vsel %vm784, %v1539, 0
      %v1608 = vsel %vm784, %v1541, 0
      %v1611 = vsel %vm784, %v1543, 0
      %v1614 = vsel %vm784, %v1545, 0
      %v1617 = vsel %vm784, %v1547, 0
      %v1620 = vsel %vm784, %v1549, 0
      %v1623 = vsel %vm784, %v1551, 0
      %v1626 = vsel %vm784, %v1553, 0
      %v1629 = vsel %vm784, %v1555, 0
      %v1632 = vsel %vm784, %v1557, 0
      %v1635 = vsel %vm784, %v1559, 0
      %v1638 = vsel %vm784, %v1561, 0
      %v1641 = vsel %vm784, %v1563, 0
      %v1644 = vsel %vm784, %v1565, 0
      %v1647 = vsel %vm784, %v1567, 0
      %v1650 = vsel %vm784, %v1569, 0
      %v1653 = vsel %vm784, %v1571, 0
      %v1656 = vsel %vm784, %v1573, 0
      %v1659 = vsel %vm784, %v1575, 0
      %v1662 = vsel %vm784, %v1577, 0
      %v1665 = vsel %vm784, %v1579, 0
      %v1668 = vsel %vm784, %v1581, 0
      %v1671 = vsel %vm784, %v1583, 0
      %v1674 = vsel %vm784, %v1585, 0
      %v1677 = vsel %vm784, %v1587, 0
      %v1680 = vsel %vm784, %v1589, 0
      %v1683 = vsel %vm784, %v1591, 0
      %v1686 = vsel %vm784, %v1593, 0
      %v1689 = vsel %vm784, %v1595, 0
      %v1692 = vsel %vm784, %v1597, 0
      %v1695 = vsel %vm881, %v1531, 0
      %1697 = vmatprep.subr.bf16.mxu0 0
      %1698 = vmatpush1.bf16.msra.mxu0 0
      %1699 = vmatprep.subr.bf16.mxu0 0
      %1700 = vmatpush1.bf16.msra.mxu0 0
      %1701 = vmatprep.subr.bf16.mxu0 0
      %1702 = vmatpush1.bf16.msra.mxu0 0
      %1703 = vmatprep.subr.bf16.mxu0 0
      %1704 = vmatpush1.bf16.msra.mxu0 0
      %1705 = vmatprep.subr.bf16.mxu0 0
      %1706 = vmatpush1.bf16.msra.mxu0 0
      %1707 = vmatprep.subr.bf16.mxu0 0
      %1708 = vmatpush1.bf16.msra.mxu0 0
      %1709 = vmatprep.subr.bf16.mxu0 0
      %1710 = vmatpush1.bf16.msra.mxu0 0
      %1711 = vmatprep.subr.bf16.mxu0 0
      %1712 = vmatpush1.bf16.msra.mxu0 %v1695
      %1713 = vmatprep.subr.bf16.mxu0 0
      %1714 = vmatpush2.bf16.msra.mxu0 0
      %1715 = vmatprep.subr.bf16.mxu0 0
      %1716 = vmatpush2.bf16.msra.mxu0 0
      %1717 = vmatprep.subr.bf16.mxu0 0
      %1718 = vmatpush2.bf16.msra.mxu0 0
      %1719 = vmatprep.subr.bf16.mxu0 0
      %1720 = vmatpush2.bf16.msra.mxu0 0
      %1721 = vmatprep.subr.bf16.mxu0 0
      %1722 = vmatpush2.bf16.msra.mxu0 0
      %1723 = vmatprep.subr.bf16.mxu0 0
      %1724 = vmatpush2.bf16.msra.mxu0 0
      %1725 = vmatprep.subr.bf16.mxu0 0
      %1726 = vmatpush2.bf16.msra.mxu0 0
      %1727 = vmatprep.subr.bf16.mxu0 0
      %1728 = vmatpush2.bf16.msra.mxu0 0
      %1729 = vmatprep.mubr.bf16.mxu0 0
      %1730 = vmatmul.mubr.bf16.gmra.mxu0 %v1599
      %v1731 = vpop.f32.mrf.mxu0
      %v1732 = vadd.f32 0.0, %v1731
      %v1733 = vpop.f32.mrf.mxu0
      %v1734 = vpop.f32.mrf.mxu0
      %v1735 = vadd.f32 0.0, %v1734
      %v1736 = vpop.f32.mrf.mxu0
      %1737 = vmatprep.mubr.bf16.mxu0 0
      %1738 = vmatmul.mubr.bf16.gmra.mxu0 %v1602
      %v1739 = vpop.f32.mrf.mxu0
      %v1740 = vadd.f32 0.0, %v1739
      %v1741 = vpop.f32.mrf.mxu0
      %v1742 = vpop.f32.mrf.mxu0
      %v1743 = vadd.f32 0.0, %v1742
      %v1744 = vpop.f32.mrf.mxu0
      %1745 = vmatprep.mubr.bf16.mxu0 0
      %1746 = vmatmul.mubr.bf16.gmra.mxu0 %v1605
      %v1747 = vpop.f32.mrf.mxu0
      %v1748 = vadd.f32 0.0, %v1747
      %v1749 = vpop.f32.mrf.mxu0
      %v1750 = vpop.f32.mrf.mxu0
      %v1751 = vadd.f32 0.0, %v1750
      %v1752 = vpop.f32.mrf.mxu0
      %1753 = vmatprep.mubr.bf16.mxu0 0
      %1754 = vmatmul.mubr.bf16.gmra.mxu0 %v1608
      %v1755 = vpop.f32.mrf.mxu0
      %v1756 = vadd.f32 0.0, %v1755
      %v1757 = vpop.f32.mrf.mxu0
      %v1758 = vpop.f32.mrf.mxu0
      %v1759 = vadd.f32 0.0, %v1758
      %v1760 = vpop.f32.mrf.mxu0
      %1761 = vmatprep.mubr.bf16.mxu0 0
      %1762 = vmatmul.mubr.bf16.gmra.mxu0 %v1611
      %v1763 = vpop.f32.mrf.mxu0
      %v1764 = vadd.f32 0.0, %v1763
      %v1765 = vpop.f32.mrf.mxu0
      %v1766 = vpop.f32.mrf.mxu0
      %v1767 = vadd.f32 0.0, %v1766
      %v1768 = vpop.f32.mrf.mxu0
      %1769 = vmatprep.mubr.bf16.mxu0 0
      %1770 = vmatmul.mubr.bf16.gmra.mxu0 %v1614
      %v1771 = vpop.f32.mrf.mxu0
      %v1772 = vadd.f32 0.0, %v1771
      %v1773 = vpop.f32.mrf.mxu0
      %v1774 = vpop.f32.mrf.mxu0
      %v1775 = vadd.f32 0.0, %v1774
      %v1776 = vpop.f32.mrf.mxu0
      %1777 = vmatprep.mubr.bf16.mxu0 0
      %1778 = vmatmul.mubr.bf16.gmra.mxu0 %v1617
      %v1779 = vpop.f32.mrf.mxu0
      %v1780 = vadd.f32 0.0, %v1779
      %v1781 = vpop.f32.mrf.mxu0
      %v1782 = vpop.f32.mrf.mxu0
      %v1783 = vadd.f32 0.0, %v1782
      %v1784 = vpop.f32.mrf.mxu0
      %1785 = vmatprep.mubr.bf16.mxu0 0
      %1786 = vmatmul.mubr.bf16.gmra.mxu0 %v1620
      %v1787 = vpop.f32.mrf.mxu0
      %v1788 = vadd.f32 0.0, %v1787
      %v1789 = vpop.f32.mrf.mxu0
      %v1790 = vpop.f32.mrf.mxu0
      %v1791 = vadd.f32 0.0, %v1790
      %v1792 = vpop.f32.mrf.mxu0
      %1793 = vmatprep.mubr.bf16.mxu0 0
      %1794 = vmatmul.mubr.bf16.gmra.mxu0 %v1623
      %v1795 = vpop.f32.mrf.mxu0
      %v1796 = vadd.f32 0.0, %v1795
      %v1797 = vpop.f32.mrf.mxu0
      %v1798 = vpop.f32.mrf.mxu0
      %v1799 = vadd.f32 0.0, %v1798
      %v1800 = vpop.f32.mrf.mxu0
      %1801 = vmatprep.mubr.bf16.mxu0 0
      %1802 = vmatmul.mubr.bf16.gmra.mxu0 %v1626
      %v1803 = vpop.f32.mrf.mxu0
      %v1804 = vadd.f32 0.0, %v1803
      %v1805 = vpop.f32.mrf.mxu0
      %v1806 = vpop.f32.mrf.mxu0
      %v1807 = vadd.f32 0.0, %v1806
      %v1808 = vpop.f32.mrf.mxu0
      %1809 = vmatprep.mubr.bf16.mxu0 0
      %1810 = vmatmul.mubr.bf16.gmra.mxu0 %v1629
      %v1811 = vpop.f32.mrf.mxu0
      %v1812 = vadd.f32 0.0, %v1811
      %v1813 = vpop.f32.mrf.mxu0
      %v1814 = vpop.f32.mrf.mxu0
      %v1815 = vadd.f32 0.0, %v1814
      %v1816 = vpop.f32.mrf.mxu0
      %1817 = vmatprep.mubr.bf16.mxu0 0
      %1818 = vmatmul.mubr.bf16.gmra.mxu0 %v1632
      %v1819 = vpop.f32.mrf.mxu0
      %v1820 = vadd.f32 0.0, %v1819
      %v1821 = vpop.f32.mrf.mxu0
      %v1822 = vpop.f32.mrf.mxu0
      %v1823 = vadd.f32 0.0, %v1822
      %v1824 = vpop.f32.mrf.mxu0
      %1825 = vmatprep.mubr.bf16.mxu0 0
      %1826 = vmatmul.mubr.bf16.gmra.mxu0 %v1635
      %v1827 = vpop.f32.mrf.mxu0
      %v1828 = vadd.f32 0.0, %v1827
      %v1829 = vpop.f32.mrf.mxu0
      %v1830 = vpop.f32.mrf.mxu0
      %v1831 = vadd.f32 0.0, %v1830
      %v1832 = vpop.f32.mrf.mxu0
      %1833 = vmatprep.mubr.bf16.mxu0 0
      %1834 = vmatmul.mubr.bf16.gmra.mxu0 %v1638
      %v1835 = vpop.f32.mrf.mxu0
      %v1836 = vadd.f32 0.0, %v1835
      %v1837 = vpop.f32.mrf.mxu0
      %v1838 = vpop.f32.mrf.mxu0
      %v1839 = vadd.f32 0.0, %v1838
      %v1840 = vpop.f32.mrf.mxu0
      %1841 = vmatprep.mubr.bf16.mxu0 0
      %1842 = vmatmul.mubr.bf16.gmra.mxu0 %v1641
      %v1843 = vpop.f32.mrf.mxu0
      %v1844 = vadd.f32 0.0, %v1843
      %v1845 = vpop.f32.mrf.mxu0
      %v1846 = vpop.f32.mrf.mxu0
      %v1847 = vadd.f32 0.0, %v1846
      %v1848 = vpop.f32.mrf.mxu0
      %1849 = vmatprep.mubr.bf16.mxu0 0
      %1850 = vmatmul.mubr.bf16.gmra.mxu0 %v1644
      %v1851 = vpop.f32.mrf.mxu0
      %v1852 = vadd.f32 0.0, %v1851
      %v1853 = vpop.f32.mrf.mxu0
      %v1854 = vpop.f32.mrf.mxu0
      %v1855 = vadd.f32 0.0, %v1854
      %v1856 = vpop.f32.mrf.mxu0
      %1857 = vmatprep.mubr.bf16.mxu0 0
      %1858 = vmatmul.mubr.bf16.gmra.mxu0 %v1647
      %v1859 = vpop.f32.mrf.mxu0
      %v1860 = vadd.f32 0.0, %v1859
      %v1861 = vpop.f32.mrf.mxu0
      %v1862 = vpop.f32.mrf.mxu0
      %v1863 = vadd.f32 0.0, %v1862
      %v1864 = vpop.f32.mrf.mxu0
      %1865 = vmatprep.mubr.bf16.mxu0 0
      %1866 = vmatmul.mubr.bf16.gmra.mxu0 %v1650
      %v1867 = vpop.f32.mrf.mxu0
      %v1868 = vadd.f32 0.0, %v1867
      %v1869 = vpop.f32.mrf.mxu0
      %v1870 = vpop.f32.mrf.mxu0
      %v1871 = vadd.f32 0.0, %v1870
      %v1872 = vpop.f32.mrf.mxu0
      %1873 = vmatprep.mubr.bf16.mxu0 0
      %1874 = vmatmul.mubr.bf16.gmra.mxu0 %v1653
      %v1875 = vpop.f32.mrf.mxu0
      %v1876 = vadd.f32 0.0, %v1875
      %v1877 = vpop.f32.mrf.mxu0
      %v1878 = vpop.f32.mrf.mxu0
      %v1879 = vadd.f32 0.0, %v1878
      %v1880 = vpop.f32.mrf.mxu0
      %1881 = vmatprep.mubr.bf16.mxu0 0
      %1882 = vmatmul.mubr.bf16.gmra.mxu0 %v1656
      %v1883 = vpop.f32.mrf.mxu0
      %v1884 = vadd.f32 0.0, %v1883
      %v1885 = vpop.f32.mrf.mxu0
      %v1886 = vpop.f32.mrf.mxu0
      %v1887 = vadd.f32 0.0, %v1886
      %v1888 = vpop.f32.mrf.mxu0
      %1889 = vmatprep.mubr.bf16.mxu0 0
      %1890 = vmatmul.mubr.bf16.gmra.mxu0 %v1659
      %v1891 = vpop.f32.mrf.mxu0
      %v1892 = vadd.f32 0.0, %v1891
      %v1893 = vpop.f32.mrf.mxu0
      %v1894 = vpop.f32.mrf.mxu0
      %v1895 = vadd.f32 0.0, %v1894
      %v1896 = vpop.f32.mrf.mxu0
      %1897 = vmatprep.mubr.bf16.mxu0 0
      %1898 = vmatmul.mubr.bf16.gmra.mxu0 %v1662
      %v1899 = vpop.f32.mrf.mxu0
      %v1900 = vadd.f32 0.0, %v1899
      %v1901 = vpop.f32.mrf.mxu0
      %v1902 = vpop.f32.mrf.mxu0
      %v1903 = vadd.f32 0.0, %v1902
      %v1904 = vpop.f32.mrf.mxu0
      %1905 = vmatprep.mubr.bf16.mxu0 0
      %1906 = vmatmul.mubr.bf16.gmra.mxu0 %v1665
      %v1907 = vpop.f32.mrf.mxu0
      %v1908 = vadd.f32 0.0, %v1907
      %v1909 = vpop.f32.mrf.mxu0
      %v1910 = vpop.f32.mrf.mxu0
      %v1911 = vadd.f32 0.0, %v1910
      %v1912 = vpop.f32.mrf.mxu0
      %1913 = vmatprep.mubr.bf16.mxu0 0
      %1914 = vmatmul.mubr.bf16.gmra.mxu0 %v1668
      %v1915 = vpop.f32.mrf.mxu0
      %v1916 = vadd.f32 0.0, %v1915
      %v1917 = vpop.f32.mrf.mxu0
      %v1918 = vpop.f32.mrf.mxu0
      %v1919 = vadd.f32 0.0, %v1918
      %v1920 = vpop.f32.mrf.mxu0
      %1921 = vmatprep.mubr.bf16.mxu0 0
      %1922 = vmatmul.mubr.bf16.gmra.mxu0 %v1671
      %v1923 = vpop.f32.mrf.mxu0
      %v1924 = vadd.f32 0.0, %v1923
      %v1925 = vpop.f32.mrf.mxu0
      %v1926 = vpop.f32.mrf.mxu0
      %v1927 = vadd.f32 0.0, %v1926
      %v1928 = vpop.f32.mrf.mxu0
      %1929 = vmatprep.mubr.bf16.mxu0 0
      %1930 = vmatmul.mubr.bf16.gmra.mxu0 %v1674
      %v1931 = vpop.f32.mrf.mxu0
      %v1932 = vadd.f32 0.0, %v1931
      %v1933 = vpop.f32.mrf.mxu0
      %v1934 = vpop.f32.mrf.mxu0
      %v1935 = vadd.f32 0.0, %v1934
      %v1936 = vpop.f32.mrf.mxu0
      %1937 = vmatprep.mubr.bf16.mxu0 0
      %1938 = vmatmul.mubr.bf16.gmra.mxu0 %v1677
      %v1939 = vpop.f32.mrf.mxu0
      %v1940 = vadd.f32 0.0, %v1939
      %v1941 = vpop.f32.mrf.mxu0
      %v1942 = vpop.f32.mrf.mxu0
      %v1943 = vadd.f32 0.0, %v1942
      %v1944 = vpop.f32.mrf.mxu0
      %1945 = vmatprep.mubr.bf16.mxu0 0
      %1946 = vmatmul.mubr.bf16.gmra.mxu0 %v1680
      %v1947 = vpop.f32.mrf.mxu0
      %v1948 = vadd.f32 0.0, %v1947
      %v1949 = vpop.f32.mrf.mxu0
      %v1950 = vpop.f32.mrf.mxu0
      %v1951 = vadd.f32 0.0, %v1950
      %v1952 = vpop.f32.mrf.mxu0
      %1953 = vmatprep.mubr.bf16.mxu0 0
      %1954 = vmatmul.mubr.bf16.gmra.mxu0 %v1683
      %v1955 = vpop.f32.mrf.mxu0
      %v1956 = vadd.f32 0.0, %v1955
      %v1957 = vpop.f32.mrf.mxu0
      %v1958 = vpop.f32.mrf.mxu0
      %v1959 = vadd.f32 0.0, %v1958
      %v1960 = vpop.f32.mrf.mxu0
      %1961 = vmatprep.mubr.bf16.mxu0 0
      %1962 = vmatmul.mubr.bf16.gmra.mxu0 %v1686
      %v1963 = vpop.f32.mrf.mxu0
      %v1964 = vadd.f32 0.0, %v1963
      %v1965 = vpop.f32.mrf.mxu0
      %v1966 = vpop.f32.mrf.mxu0
      %v1967 = vadd.f32 0.0, %v1966
      %v1968 = vpop.f32.mrf.mxu0
      %1969 = vmatprep.mubr.bf16.mxu0 0
      %1970 = vmatmul.mubr.bf16.gmra.mxu0 %v1689
      %v1971 = vpop.f32.mrf.mxu0
      %v1972 = vadd.f32 0.0, %v1971
      %v1973 = vpop.f32.mrf.mxu0
      %v1974 = vpop.f32.mrf.mxu0
      %v1975 = vadd.f32 0.0, %v1974
      %v1976 = vpop.f32.mrf.mxu0
      %1977 = vmatprep.mubr.bf16.mxu0 0
      %1978 = vmatmul.mubr.bf16.gmra.mxu0 %v1692
      %v1979 = vpop.f32.mrf.mxu0
      %v1980 = vadd.f32 0.0, %v1979
      %v1981 = vpop.f32.mrf.mxu0
      %v1982 = vpop.f32.mrf.mxu0
      %v1983 = vadd.f32 0.0, %v1982
      %v1984 = vpop.f32.mrf.mxu0
      %1985 = vdwg.mxu0
      %v1986 = vadd.f32 %v1276, %v1732
      %v1987 = vadd.f32 %v1279, %v1735
      %v1988 = vadd.f32 %v1284, %v1740
      %v1989 = vadd.f32 %v1287, %v1743
      %v1990 = vadd.f32 %v1292, %v1748
      %v1991 = vadd.f32 %v1295, %v1751
      %v1992 = vadd.f32 %v1300, %v1756
      %v1993 = vadd.f32 %v1303, %v1759
      %v1994 = vadd.f32 %v1308, %v1764
      %v1995 = vadd.f32 %v1311, %v1767
      %v1996 = vadd.f32 %v1316, %v1772
      %v1997 = vadd.f32 %v1319, %v1775
      %v1998 = vadd.f32 %v1324, %v1780
      %v1999 = vadd.f32 %v1327, %v1783
      %v2000 = vadd.f32 %v1332, %v1788
      %v2001 = vadd.f32 %v1335, %v1791
      %v2002 = vadd.f32 %v1340, %v1796
      %v2003 = vadd.f32 %v1343, %v1799
      %v2004 = vadd.f32 %v1348, %v1804
      %v2005 = vadd.f32 %v1351, %v1807
      %v2006 = vadd.f32 %v1356, %v1812
      %v2007 = vadd.f32 %v1359, %v1815
      %v2008 = vadd.f32 %v1364, %v1820
      %v2009 = vadd.f32 %v1367, %v1823
      %v2010 = vadd.f32 %v1372, %v1828
      %v2011 = vadd.f32 %v1375, %v1831
      %v2012 = vadd.f32 %v1380, %v1836
      %v2013 = vadd.f32 %v1383, %v1839
      %v2014 = vadd.f32 %v1388, %v1844
      %v2015 = vadd.f32 %v1391, %v1847
      %v2016 = vadd.f32 %v1396, %v1852
      %v2017 = vadd.f32 %v1399, %v1855
      %v2018 = vadd.f32 %v1404, %v1860
      %v2019 = vadd.f32 %v1407, %v1863
      %v2020 = vadd.f32 %v1412, %v1868
      %v2021 = vadd.f32 %v1415, %v1871
      %v2022 = vadd.f32 %v1420, %v1876
      %v2023 = vadd.f32 %v1423, %v1879
      %v2024 = vadd.f32 %v1428, %v1884
      %v2025 = vadd.f32 %v1431, %v1887
      %v2026 = vadd.f32 %v1436, %v1892
      %v2027 = vadd.f32 %v1439, %v1895
      %v2028 = vadd.f32 %v1444, %v1900
      %v2029 = vadd.f32 %v1447, %v1903
      %v2030 = vadd.f32 %v1452, %v1908
      %v2031 = vadd.f32 %v1455, %v1911
      %v2032 = vadd.f32 %v1460, %v1916
      %v2033 = vadd.f32 %v1463, %v1919
      %v2034 = vadd.f32 %v1468, %v1924
      %v2035 = vadd.f32 %v1471, %v1927
      %v2036 = vadd.f32 %v1476, %v1932
      %v2037 = vadd.f32 %v1479, %v1935
      %v2038 = vadd.f32 %v1484, %v1940
      %v2039 = vadd.f32 %v1487, %v1943
      %v2040 = vadd.f32 %v1492, %v1948
      %v2041 = vadd.f32 %v1495, %v1951
      %v2042 = vadd.f32 %v1500, %v1956
      %v2043 = vadd.f32 %v1503, %v1959
      %v2044 = vadd.f32 %v1508, %v1964
      %v2045 = vadd.f32 %v1511, %v1967
      %v2046 = vadd.f32 %v1516, %v1972
      %v2047 = vadd.f32 %v1519, %v1975
      %v2048 = vadd.f32 %v1524, %v1980
      %v2049 = vadd.f32 %v1527, %v1983
      %s2050 = scalar_lea.vmem %s268, 6
      %v2051 = vld [vmem:[%s2050] sm:$0x3]
      %vm2052 = vsmask.f32 6400
      %v2053 = vrot.slane %v536, 1
      %v2054 = vrot.slane %v532, 2
      %v2055 = vor.u32 %v2053, %v2054
      %v2056 = vrot.slane %v544, 1
      %v2057 = vrot.slane %v540, 2
      %v2058 = vor.u32 %v2056, %v2057
      %v2059 = vsel %vm2052, %v2055, %v2058
      %v2060 = vrot.slane %v552, 1
      %v2061 = vrot.slane %v548, 2
      %v2062 = vor.u32 %v2060, %v2061
      %v2063 = vsel %vm2052, %v2058, %v2062
      %v2064 = vrot.slane %v560, 1
      %v2065 = vrot.slane %v556, 2
      %v2066 = vor.u32 %v2064, %v2065
      %v2067 = vsel %vm2052, %v2062, %v2066
      %v2068 = vrot.slane %v568, 1
      %v2069 = vrot.slane %v564, 2
      %v2070 = vor.u32 %v2068, %v2069
      %v2071 = vsel %vm2052, %v2066, %v2070
      %v2072 = vrot.slane %v576, 1
      %v2073 = vrot.slane %v572, 2
      %v2074 = vor.u32 %v2072, %v2073
      %v2075 = vsel %vm2052, %v2070, %v2074
      %v2076 = vrot.slane %v584, 1
      %v2077 = vrot.slane %v580, 2
      %v2078 = vor.u32 %v2076, %v2077
      %v2079 = vsel %vm2052, %v2074, %v2078
      %v2080 = vrot.slane %v592, 1
      %v2081 = vrot.slane %v588, 2
      %v2082 = vor.u32 %v2080, %v2081
      %v2083 = vsel %vm2052, %v2078, %v2082
      %v2084 = vrot.slane %v600, 1
      %v2085 = vrot.slane %v596, 2
      %v2086 = vor.u32 %v2084, %v2085
      %v2087 = vsel %vm2052, %v2082, %v2086
      %v2088 = vrot.slane %v608, 1
      %v2089 = vrot.slane %v604, 2
      %v2090 = vor.u32 %v2088, %v2089
      %v2091 = vsel %vm2052, %v2086, %v2090
      %v2092 = vrot.slane %v616, 1
      %v2093 = vrot.slane %v612, 2
      %v2094 = vor.u32 %v2092, %v2093
      %v2095 = vsel %vm2052, %v2090, %v2094
      %v2096 = vrot.slane %v624, 1
      %v2097 = vrot.slane %v620, 2
      %v2098 = vor.u32 %v2096, %v2097
      %v2099 = vsel %vm2052, %v2094, %v2098
      %v2100 = vrot.slane %v632, 1
      %v2101 = vrot.slane %v628, 2
      %v2102 = vor.u32 %v2100, %v2101
      %v2103 = vsel %vm2052, %v2098, %v2102
      %v2104 = vrot.slane %v640, 1
      %v2105 = vrot.slane %v636, 2
      %v2106 = vor.u32 %v2104, %v2105
      %v2107 = vsel %vm2052, %v2102, %v2106
      %v2108 = vrot.slane %v648, 1
      %v2109 = vrot.slane %v644, 2
      %v2110 = vor.u32 %v2108, %v2109
      %v2111 = vsel %vm2052, %v2106, %v2110
      %v2112 = vrot.slane %v656, 1
      %v2113 = vrot.slane %v652, 2
      %v2114 = vor.u32 %v2112, %v2113
      %v2115 = vsel %vm2052, %v2110, %v2114
      %v2116 = vrot.slane %v664, 1
      %v2117 = vrot.slane %v660, 2
      %v2118 = vor.u32 %v2116, %v2117
      %v2119 = vsel %vm2052, %v2114, %v2118
      %v2120 = vrot.slane %v672, 1
      %v2121 = vrot.slane %v668, 2
      %v2122 = vor.u32 %v2120, %v2121
      %v2123 = vsel %vm2052, %v2118, %v2122
      %v2124 = vrot.slane %v680, 1
      %v2125 = vrot.slane %v676, 2
      %v2126 = vor.u32 %v2124, %v2125
      %v2127 = vsel %vm2052, %v2122, %v2126
      %v2128 = vrot.slane %v688, 1
      %v2129 = vrot.slane %v684, 2
      %v2130 = vor.u32 %v2128, %v2129
      %v2131 = vsel %vm2052, %v2126, %v2130
      %v2132 = vrot.slane %v696, 1
      %v2133 = vrot.slane %v692, 2
      %v2134 = vor.u32 %v2132, %v2133
      %v2135 = vsel %vm2052, %v2130, %v2134
      %v2136 = vrot.slane %v704, 1
      %v2137 = vrot.slane %v700, 2
      %v2138 = vor.u32 %v2136, %v2137
      %v2139 = vsel %vm2052, %v2134, %v2138
      %v2140 = vrot.slane %v712, 1
      %v2141 = vrot.slane %v708, 2
      %v2142 = vor.u32 %v2140, %v2141
      %v2143 = vsel %vm2052, %v2138, %v2142
      %v2144 = vrot.slane %v720, 1
      %v2145 = vrot.slane %v716, 2
      %v2146 = vor.u32 %v2144, %v2145
      %v2147 = vsel %vm2052, %v2142, %v2146
      %v2148 = vrot.slane %v728, 1
      %v2149 = vrot.slane %v724, 2
      %v2150 = vor.u32 %v2148, %v2149
      %v2151 = vsel %vm2052, %v2146, %v2150
      %v2152 = vrot.slane %v736, 1
      %v2153 = vrot.slane %v732, 2
      %v2154 = vor.u32 %v2152, %v2153
      %v2155 = vsel %vm2052, %v2150, %v2154
      %v2156 = vrot.slane %v744, 1
      %v2157 = vrot.slane %v740, 2
      %v2158 = vor.u32 %v2156, %v2157
      %v2159 = vsel %vm2052, %v2154, %v2158
      %v2160 = vrot.slane %v752, 1
      %v2161 = vrot.slane %v748, 2
      %v2162 = vor.u32 %v2160, %v2161
      %v2163 = vsel %vm2052, %v2158, %v2162
      %v2164 = vrot.slane %v760, 1
      %v2165 = vrot.slane %v756, 2
      %v2166 = vor.u32 %v2164, %v2165
      %v2167 = vsel %vm2052, %v2162, %v2166
      %v2168 = vrot.slane %v768, 1
      %v2169 = vrot.slane %v764, 2
      %v2170 = vor.u32 %v2168, %v2169
      %v2171 = vsel %vm2052, %v2166, %v2170
      %v2172 = vrot.slane %v776, 1
      %v2173 = vrot.slane %v772, 2
      %v2174 = vor.u32 %v2172, %v2173
      %v2175 = vsel %vm2052, %v2170, %v2174
      %v2176 = vshrl.u32 %v518, 16
      %v2178 = vrot.slane %v2176, 1
      %v2179 = vrot.slane %v780, 2
      %v2180 = vor.u32 %v2178, %v2179
      %v2181 = vsel %vm2052, %v2174, %v2180
      %v2183 = vshrl.u32 %v519, 16
      %v2185 = vrot.slane %v2183, 1
      %v2186 = vshll.u32 %v519, 16
      %v2188 = vrot.slane %v2186, 2
      %v2189 = vor.u32 %v2185, %v2188
      %v2190 = vsel %vm2052, %v2180, %v2189
      %v2192 = vsel %vm784, %v2059, 0
      %v2195 = vsel %vm784, %v2063, 0
      %v2198 = vsel %vm784, %v2067, 0
      %v2201 = vsel %vm784, %v2071, 0
      %v2204 = vsel %vm784, %v2075, 0
      %v2207 = vsel %vm784, %v2079, 0
      %v2210 = vsel %vm784, %v2083, 0
      %v2213 = vsel %vm784, %v2087, 0
      %v2216 = vsel %vm784, %v2091, 0
      %v2219 = vsel %vm784, %v2095, 0
      %v2222 = vsel %vm784, %v2099, 0
      %v2225 = vsel %vm784, %v2103, 0
      %v2228 = vsel %vm784, %v2107, 0
      %v2231 = vsel %vm784, %v2111, 0
      %v2234 = vsel %vm784, %v2115, 0
      %v2237 = vsel %vm784, %v2119, 0
      %v2240 = vsel %vm784, %v2123, 0
      %v2243 = vsel %vm784, %v2127, 0
      %v2246 = vsel %vm784, %v2131, 0
      %v2249 = vsel %vm784, %v2135, 0
      %v2252 = vsel %vm784, %v2139, 0
      %v2255 = vsel %vm784, %v2143, 0
      %v2258 = vsel %vm784, %v2147, 0
      %v2261 = vsel %vm784, %v2151, 0
      %v2264 = vsel %vm784, %v2155, 0
      %v2267 = vsel %vm784, %v2159, 0
      %v2270 = vsel %vm784, %v2163, 0
      %v2273 = vsel %vm784, %v2167, 0
      %v2276 = vsel %vm784, %v2171, 0
      %v2279 = vsel %vm784, %v2175, 0
      %v2282 = vsel %vm784, %v2181, 0
      %v2285 = vsel %vm784, %v2190, 0
      %v2288 = vsel %vm881, %v2051, 0
      %2290 = vmatprep.subr.bf16.mxu0 0
      %2291 = vmatpush1.bf16.msra.mxu0 0
      %2292 = vmatprep.subr.bf16.mxu0 0
      %2293 = vmatpush1.bf16.msra.mxu0 0
      %2294 = vmatprep.subr.bf16.mxu0 0
      %2295 = vmatpush1.bf16.msra.mxu0 0
      %2296 = vmatprep.subr.bf16.mxu0 0
      %2297 = vmatpush1.bf16.msra.mxu0 0
      %2298 = vmatprep.subr.bf16.mxu0 0
      %2299 = vmatpush1.bf16.msra.mxu0 0
      %2300 = vmatprep.subr.bf16.mxu0 0
      %2301 = vmatpush1.bf16.msra.mxu0 0
      %2302 = vmatprep.subr.bf16.mxu0 0
      %2303 = vmatpush1.bf16.msra.mxu0 0
      %2304 = vmatprep.subr.bf16.mxu0 0
      %2305 = vmatpush1.bf16.msra.mxu0 %v2288
      %2306 = vmatprep.subr.bf16.mxu0 0
      %2307 = vmatpush2.bf16.msra.mxu0 0
      %2308 = vmatprep.subr.bf16.mxu0 0
      %2309 = vmatpush2.bf16.msra.mxu0 0
      %2310 = vmatprep.subr.bf16.mxu0 0
      %2311 = vmatpush2.bf16.msra.mxu0 0
      %2312 = vmatprep.subr.bf16.mxu0 0
      %2313 = vmatpush2.bf16.msra.mxu0 0
      %2314 = vmatprep.subr.bf16.mxu0 0
      %2315 = vmatpush2.bf16.msra.mxu0 0
      %2316 = vmatprep.subr.bf16.mxu0 0
      %2317 = vmatpush2.bf16.msra.mxu0 0
      %2318 = vmatprep.subr.bf16.mxu0 0
      %2319 = vmatpush2.bf16.msra.mxu0 0
      %2320 = vmatprep.subr.bf16.mxu0 0
      %2321 = vmatpush2.bf16.msra.mxu0 0
      %2322 = vmatprep.mubr.bf16.mxu0 0
      %2323 = vmatmul.mubr.bf16.gmra.mxu0 %v2192
      %v2324 = vpop.f32.mrf.mxu0
      %v2325 = vadd.f32 0.0, %v2324
      %v2326 = vpop.f32.mrf.mxu0
      %v2327 = vpop.f32.mrf.mxu0
      %v2328 = vadd.f32 0.0, %v2327
      %v2329 = vpop.f32.mrf.mxu0
      %2330 = vmatprep.mubr.bf16.mxu0 0
      %2331 = vmatmul.mubr.bf16.gmra.mxu0 %v2195
      %v2332 = vpop.f32.mrf.mxu0
      %v2333 = vadd.f32 0.0, %v2332
      %v2334 = vpop.f32.mrf.mxu0
      %v2335 = vpop.f32.mrf.mxu0
      %v2336 = vadd.f32 0.0, %v2335
      %v2337 = vpop.f32.mrf.mxu0
      %2338 = vmatprep.mubr.bf16.mxu0 0
      %2339 = vmatmul.mubr.bf16.gmra.mxu0 %v2198
      %v2340 = vpop.f32.mrf.mxu0
      %v2341 = vadd.f32 0.0, %v2340
      %v2342 = vpop.f32.mrf.mxu0
      %v2343 = vpop.f32.mrf.mxu0
      %v2344 = vadd.f32 0.0, %v2343
      %v2345 = vpop.f32.mrf.mxu0
      %2346 = vmatprep.mubr.bf16.mxu0 0
      %2347 = vmatmul.mubr.bf16.gmra.mxu0 %v2201
      %v2348 = vpop.f32.mrf.mxu0
      %v2349 = vadd.f32 0.0, %v2348
      %v2350 = vpop.f32.mrf.mxu0
      %v2351 = vpop.f32.mrf.mxu0
      %v2352 = vadd.f32 0.0, %v2351
      %v2353 = vpop.f32.mrf.mxu0
      %2354 = vmatprep.mubr.bf16.mxu0 0
      %2355 = vmatmul.mubr.bf16.gmra.mxu0 %v2204
      %v2356 = vpop.f32.mrf.mxu0
      %v2357 = vadd.f32 0.0, %v2356
      %v2358 = vpop.f32.mrf.mxu0
      %v2359 = vpop.f32.mrf.mxu0
      %v2360 = vadd.f32 0.0, %v2359
      %v2361 = vpop.f32.mrf.mxu0
      %2362 = vmatprep.mubr.bf16.mxu0 0
      %2363 = vmatmul.mubr.bf16.gmra.mxu0 %v2207
      %v2364 = vpop.f32.mrf.mxu0
      %v2365 = vadd.f32 0.0, %v2364
      %v2366 = vpop.f32.mrf.mxu0
      %v2367 = vpop.f32.mrf.mxu0
      %v2368 = vadd.f32 0.0, %v2367
      %v2369 = vpop.f32.mrf.mxu0
      %2370 = vmatprep.mubr.bf16.mxu0 0
      %2371 = vmatmul.mubr.bf16.gmra.mxu0 %v2210
      %v2372 = vpop.f32.mrf.mxu0
      %v2373 = vadd.f32 0.0, %v2372
      %v2374 = vpop.f32.mrf.mxu0
      %v2375 = vpop.f32.mrf.mxu0
      %v2376 = vadd.f32 0.0, %v2375
      %v2377 = vpop.f32.mrf.mxu0
      %2378 = vmatprep.mubr.bf16.mxu0 0
      %2379 = vmatmul.mubr.bf16.gmra.mxu0 %v2213
      %v2380 = vpop.f32.mrf.mxu0
      %v2381 = vadd.f32 0.0, %v2380
      %v2382 = vpop.f32.mrf.mxu0
      %v2383 = vpop.f32.mrf.mxu0
      %v2384 = vadd.f32 0.0, %v2383
      %v2385 = vpop.f32.mrf.mxu0
      %2386 = vmatprep.mubr.bf16.mxu0 0
      %2387 = vmatmul.mubr.bf16.gmra.mxu0 %v2216
      %v2388 = vpop.f32.mrf.mxu0
      %v2389 = vadd.f32 0.0, %v2388
      %v2390 = vpop.f32.mrf.mxu0
      %v2391 = vpop.f32.mrf.mxu0
      %v2392 = vadd.f32 0.0, %v2391
      %v2393 = vpop.f32.mrf.mxu0
      %2394 = vmatprep.mubr.bf16.mxu0 0
      %2395 = vmatmul.mubr.bf16.gmra.mxu0 %v2219
      %v2396 = vpop.f32.mrf.mxu0
      %v2397 = vadd.f32 0.0, %v2396
      %v2398 = vpop.f32.mrf.mxu0
      %v2399 = vpop.f32.mrf.mxu0
      %v2400 = vadd.f32 0.0, %v2399
      %v2401 = vpop.f32.mrf.mxu0
      %2402 = vmatprep.mubr.bf16.mxu0 0
      %2403 = vmatmul.mubr.bf16.gmra.mxu0 %v2222
      %v2404 = vpop.f32.mrf.mxu0
      %v2405 = vadd.f32 0.0, %v2404
      %v2406 = vpop.f32.mrf.mxu0
      %v2407 = vpop.f32.mrf.mxu0
      %v2408 = vadd.f32 0.0, %v2407
      %v2409 = vpop.f32.mrf.mxu0
      %2410 = vmatprep.mubr.bf16.mxu0 0
      %2411 = vmatmul.mubr.bf16.gmra.mxu0 %v2225
      %v2412 = vpop.f32.mrf.mxu0
      %v2413 = vadd.f32 0.0, %v2412
      %v2414 = vpop.f32.mrf.mxu0
      %v2415 = vpop.f32.mrf.mxu0
      %v2416 = vadd.f32 0.0, %v2415
      %v2417 = vpop.f32.mrf.mxu0
      %2418 = vmatprep.mubr.bf16.mxu0 0
      %2419 = vmatmul.mubr.bf16.gmra.mxu0 %v2228
      %v2420 = vpop.f32.mrf.mxu0
      %v2421 = vadd.f32 0.0, %v2420
      %v2422 = vpop.f32.mrf.mxu0
      %v2423 = vpop.f32.mrf.mxu0
      %v2424 = vadd.f32 0.0, %v2423
      %v2425 = vpop.f32.mrf.mxu0
      %2426 = vmatprep.mubr.bf16.mxu0 0
      %2427 = vmatmul.mubr.bf16.gmra.mxu0 %v2231
      %v2428 = vpop.f32.mrf.mxu0
      %v2429 = vadd.f32 0.0, %v2428
      %v2430 = vpop.f32.mrf.mxu0
      %v2431 = vpop.f32.mrf.mxu0
      %v2432 = vadd.f32 0.0, %v2431
      %v2433 = vpop.f32.mrf.mxu0
      %2434 = vmatprep.mubr.bf16.mxu0 0
      %2435 = vmatmul.mubr.bf16.gmra.mxu0 %v2234
      %v2436 = vpop.f32.mrf.mxu0
      %v2437 = vadd.f32 0.0, %v2436
      %v2438 = vpop.f32.mrf.mxu0
      %v2439 = vpop.f32.mrf.mxu0
      %v2440 = vadd.f32 0.0, %v2439
      %v2441 = vpop.f32.mrf.mxu0
      %2442 = vmatprep.mubr.bf16.mxu0 0
      %2443 = vmatmul.mubr.bf16.gmra.mxu0 %v2237
      %v2444 = vpop.f32.mrf.mxu0
      %v2445 = vadd.f32 0.0, %v2444
      %v2446 = vpop.f32.mrf.mxu0
      %v2447 = vpop.f32.mrf.mxu0
      %v2448 = vadd.f32 0.0, %v2447
      %v2449 = vpop.f32.mrf.mxu0
      %2450 = vmatprep.mubr.bf16.mxu0 0
      %2451 = vmatmul.mubr.bf16.gmra.mxu0 %v2240
      %v2452 = vpop.f32.mrf.mxu0
      %v2453 = vadd.f32 0.0, %v2452
      %v2454 = vpop.f32.mrf.mxu0
      %v2455 = vpop.f32.mrf.mxu0
      %v2456 = vadd.f32 0.0, %v2455
      %v2457 = vpop.f32.mrf.mxu0
      %2458 = vmatprep.mubr.bf16.mxu0 0
      %2459 = vmatmul.mubr.bf16.gmra.mxu0 %v2243
      %v2460 = vpop.f32.mrf.mxu0
      %v2461 = vadd.f32 0.0, %v2460
      %v2462 = vpop.f32.mrf.mxu0
      %v2463 = vpop.f32.mrf.mxu0
      %v2464 = vadd.f32 0.0, %v2463
      %v2465 = vpop.f32.mrf.mxu0
      %2466 = vmatprep.mubr.bf16.mxu0 0
      %2467 = vmatmul.mubr.bf16.gmra.mxu0 %v2246
      %v2468 = vpop.f32.mrf.mxu0
      %v2469 = vadd.f32 0.0, %v2468
      %v2470 = vpop.f32.mrf.mxu0
      %v2471 = vpop.f32.mrf.mxu0
      %v2472 = vadd.f32 0.0, %v2471
      %v2473 = vpop.f32.mrf.mxu0
      %2474 = vmatprep.mubr.bf16.mxu0 0
      %2475 = vmatmul.mubr.bf16.gmra.mxu0 %v2249
      %v2476 = vpop.f32.mrf.mxu0
      %v2477 = vadd.f32 0.0, %v2476
      %v2478 = vpop.f32.mrf.mxu0
      %v2479 = vpop.f32.mrf.mxu0
      %v2480 = vadd.f32 0.0, %v2479
      %v2481 = vpop.f32.mrf.mxu0
      %2482 = vmatprep.mubr.bf16.mxu0 0
      %2483 = vmatmul.mubr.bf16.gmra.mxu0 %v2252
      %v2484 = vpop.f32.mrf.mxu0
      %v2485 = vadd.f32 0.0, %v2484
      %v2486 = vpop.f32.mrf.mxu0
      %v2487 = vpop.f32.mrf.mxu0
      %v2488 = vadd.f32 0.0, %v2487
      %v2489 = vpop.f32.mrf.mxu0
      %2490 = vmatprep.mubr.bf16.mxu0 0
      %2491 = vmatmul.mubr.bf16.gmra.mxu0 %v2255
      %v2492 = vpop.f32.mrf.mxu0
      %v2493 = vadd.f32 0.0, %v2492
      %v2494 = vpop.f32.mrf.mxu0
      %v2495 = vpop.f32.mrf.mxu0
      %v2496 = vadd.f32 0.0, %v2495
      %v2497 = vpop.f32.mrf.mxu0
      %2498 = vmatprep.mubr.bf16.mxu0 0
      %2499 = vmatmul.mubr.bf16.gmra.mxu0 %v2258
      %v2500 = vpop.f32.mrf.mxu0
      %v2501 = vadd.f32 0.0, %v2500
      %v2502 = vpop.f32.mrf.mxu0
      %v2503 = vpop.f32.mrf.mxu0
      %v2504 = vadd.f32 0.0, %v2503
      %v2505 = vpop.f32.mrf.mxu0
      %2506 = vmatprep.mubr.bf16.mxu0 0
      %2507 = vmatmul.mubr.bf16.gmra.mxu0 %v2261
      %v2508 = vpop.f32.mrf.mxu0
      %v2509 = vadd.f32 0.0, %v2508
      %v2510 = vpop.f32.mrf.mxu0
      %v2511 = vpop.f32.mrf.mxu0
      %v2512 = vadd.f32 0.0, %v2511
      %v2513 = vpop.f32.mrf.mxu0
      %2514 = vmatprep.mubr.bf16.mxu0 0
      %2515 = vmatmul.mubr.bf16.gmra.mxu0 %v2264
      %v2516 = vpop.f32.mrf.mxu0
      %v2517 = vadd.f32 0.0, %v2516
      %v2518 = vpop.f32.mrf.mxu0
      %v2519 = vpop.f32.mrf.mxu0
      %v2520 = vadd.f32 0.0, %v2519
      %v2521 = vpop.f32.mrf.mxu0
      %2522 = vmatprep.mubr.bf16.mxu0 0
      %2523 = vmatmul.mubr.bf16.gmra.mxu0 %v2267
      %v2524 = vpop.f32.mrf.mxu0
      %v2525 = vadd.f32 0.0, %v2524
      %v2526 = vpop.f32.mrf.mxu0
      %v2527 = vpop.f32.mrf.mxu0
      %v2528 = vadd.f32 0.0, %v2527
      %v2529 = vpop.f32.mrf.mxu0
      %2530 = vmatprep.mubr.bf16.mxu0 0
      %2531 = vmatmul.mubr.bf16.gmra.mxu0 %v2270
      %v2532 = vpop.f32.mrf.mxu0
      %v2533 = vadd.f32 0.0, %v2532
      %v2534 = vpop.f32.mrf.mxu0
      %v2535 = vpop.f32.mrf.mxu0
      %v2536 = vadd.f32 0.0, %v2535
      %v2537 = vpop.f32.mrf.mxu0
      %2538 = vmatprep.mubr.bf16.mxu0 0
      %2539 = vmatmul.mubr.bf16.gmra.mxu0 %v2273
      %v2540 = vpop.f32.mrf.mxu0
      %v2541 = vadd.f32 0.0, %v2540
      %v2542 = vpop.f32.mrf.mxu0
      %v2543 = vpop.f32.mrf.mxu0
      %v2544 = vadd.f32 0.0, %v2543
      %v2545 = vpop.f32.mrf.mxu0
      %2546 = vmatprep.mubr.bf16.mxu0 0
      %2547 = vmatmul.mubr.bf16.gmra.mxu0 %v2276
      %v2548 = vpop.f32.mrf.mxu0
      %v2549 = vadd.f32 0.0, %v2548
      %v2550 = vpop.f32.mrf.mxu0
      %v2551 = vpop.f32.mrf.mxu0
      %v2552 = vadd.f32 0.0, %v2551
      %v2553 = vpop.f32.mrf.mxu0
      %2554 = vmatprep.mubr.bf16.mxu0 0
      %2555 = vmatmul.mubr.bf16.gmra.mxu0 %v2279
      %v2556 = vpop.f32.mrf.mxu0
      %v2557 = vadd.f32 0.0, %v2556
      %v2558 = vpop.f32.mrf.mxu0
      %v2559 = vpop.f32.mrf.mxu0
      %v2560 = vadd.f32 0.0, %v2559
      %v2561 = vpop.f32.mrf.mxu0
      %2562 = vmatprep.mubr.bf16.mxu0 0
      %2563 = vmatmul.mubr.bf16.gmra.mxu0 %v2282
      %v2564 = vpop.f32.mrf.mxu0
      %v2565 = vadd.f32 0.0, %v2564
      %v2566 = vpop.f32.mrf.mxu0
      %v2567 = vpop.f32.mrf.mxu0
      %v2568 = vadd.f32 0.0, %v2567
      %v2569 = vpop.f32.mrf.mxu0
      %2570 = vmatprep.mubr.bf16.mxu0 0
      %2571 = vmatmul.mubr.bf16.gmra.mxu0 %v2285
      %v2572 = vpop.f32.mrf.mxu0
      %v2573 = vadd.f32 0.0, %v2572
      %v2574 = vpop.f32.mrf.mxu0
      %v2575 = vpop.f32.mrf.mxu0
      %v2576 = vadd.f32 0.0, %v2575
      %v2577 = vpop.f32.mrf.mxu0
      %2578 = vdwg.mxu0
      %v2579 = vadd.f32 %v1986, %v2325
      %v2580 = vadd.f32 %v1987, %v2328
      %v2581 = vadd.f32 %v1988, %v2333
      %v2582 = vadd.f32 %v1989, %v2336
      %v2583 = vadd.f32 %v1990, %v2341
      %v2584 = vadd.f32 %v1991, %v2344
      %v2585 = vadd.f32 %v1992, %v2349
      %v2586 = vadd.f32 %v1993, %v2352
      %v2587 = vadd.f32 %v1994, %v2357
      %v2588 = vadd.f32 %v1995, %v2360
      %v2589 = vadd.f32 %v1996, %v2365
      %v2590 = vadd.f32 %v1997, %v2368
      %v2591 = vadd.f32 %v1998, %v2373
      %v2592 = vadd.f32 %v1999, %v2376
      %v2593 = vadd.f32 %v2000, %v2381
      %v2594 = vadd.f32 %v2001, %v2384
      %v2595 = vadd.f32 %v2002, %v2389
      %v2596 = vadd.f32 %v2003, %v2392
      %v2597 = vadd.f32 %v2004, %v2397
      %v2598 = vadd.f32 %v2005, %v2400
      %v2599 = vadd.f32 %v2006, %v2405
      %v2600 = vadd.f32 %v2007, %v2408
      %v2601 = vadd.f32 %v2008, %v2413
      %v2602 = vadd.f32 %v2009, %v2416
      %v2603 = vadd.f32 %v2010, %v2421
      %v2604 = vadd.f32 %v2011, %v2424
      %v2605 = vadd.f32 %v2012, %v2429
      %v2606 = vadd.f32 %v2013, %v2432
      %v2607 = vadd.f32 %v2014, %v2437
      %v2608 = vadd.f32 %v2015, %v2440
      %v2609 = vadd.f32 %v2016, %v2445
      %v2610 = vadd.f32 %v2017, %v2448
      %v2611 = vadd.f32 %v2018, %v2453
      %v2612 = vadd.f32 %v2019, %v2456
      %v2613 = vadd.f32 %v2020, %v2461
      %v2614 = vadd.f32 %v2021, %v2464
      %v2615 = vadd.f32 %v2022, %v2469
      %v2616 = vadd.f32 %v2023, %v2472
      %v2617 = vadd.f32 %v2024, %v2477
      %v2618 = vadd.f32 %v2025, %v2480
      %v2619 = vadd.f32 %v2026, %v2485
      %v2620 = vadd.f32 %v2027, %v2488
      %v2621 = vadd.f32 %v2028, %v2493
      %v2622 = vadd.f32 %v2029, %v2496
      %v2623 = vadd.f32 %v2030, %v2501
      %v2624 = vadd.f32 %v2031, %v2504
      %v2625 = vadd.f32 %v2032, %v2509
      %v2626 = vadd.f32 %v2033, %v2512
      %v2627 = vadd.f32 %v2034, %v2517
      %v2628 = vadd.f32 %v2035, %v2520
      %v2629 = vadd.f32 %v2036, %v2525
      %v2630 = vadd.f32 %v2037, %v2528
      %v2631 = vadd.f32 %v2038, %v2533
      %v2632 = vadd.f32 %v2039, %v2536
      %v2633 = vadd.f32 %v2040, %v2541
      %v2634 = vadd.f32 %v2041, %v2544
      %v2635 = vadd.f32 %v2042, %v2549
      %v2636 = vadd.f32 %v2043, %v2552
      %v2637 = vadd.f32 %v2044, %v2557
      %v2638 = vadd.f32 %v2045, %v2560
      %v2639 = vadd.f32 %v2046, %v2565
      %v2640 = vadd.f32 %v2047, %v2568
      %v2641 = vadd.f32 %v2048, %v2573
      %v2642 = vadd.f32 %v2049, %v2576
      %v2643 = vld [vmem:[%s271] sm:$0x1]
      %v2645 = vlaneseq
      %v2646 = vshrl.u32 %v2645, 7
      %v2647 = vsub.s32 0, %v2646
      %v2648 = vrot.slane %v2643, %v2647
      %v2650 = vadd.f32 %v2579, %v2648
      %v2651 = vadd.f32 %v2580, %v2648
      %v2652 = vadd.f32 %v2581, %v2648
      %v2653 = vadd.f32 %v2582, %v2648
      %v2654 = vadd.f32 %v2583, %v2648
      %v2655 = vadd.f32 %v2584, %v2648
      %v2656 = vadd.f32 %v2585, %v2648
      %v2657 = vadd.f32 %v2586, %v2648
      %v2658 = vadd.f32 %v2587, %v2648
      %v2659 = vadd.f32 %v2588, %v2648
      %v2660 = vadd.f32 %v2589, %v2648
      %v2661 = vadd.f32 %v2590, %v2648
      %v2662 = vadd.f32 %v2591, %v2648
      %v2663 = vadd.f32 %v2592, %v2648
      %v2664 = vadd.f32 %v2593, %v2648
      %v2665 = vadd.f32 %v2594, %v2648
      %v2666 = vadd.f32 %v2595, %v2648
      %v2667 = vadd.f32 %v2596, %v2648
      %v2668 = vadd.f32 %v2597, %v2648
      %v2669 = vadd.f32 %v2598, %v2648
      %v2670 = vadd.f32 %v2599, %v2648
      %v2671 = vadd.f32 %v2600, %v2648
      %v2672 = vadd.f32 %v2601, %v2648
      %v2673 = vadd.f32 %v2602, %v2648
      %v2674 = vadd.f32 %v2603, %v2648
      %v2675 = vadd.f32 %v2604, %v2648
      %v2676 = vadd.f32 %v2605, %v2648
      %v2677 = vadd.f32 %v2606, %v2648
      %v2678 = vadd.f32 %v2607, %v2648
      %v2679 = vadd.f32 %v2608, %v2648
      %v2680 = vadd.f32 %v2609, %v2648
      %v2681 = vadd.f32 %v2610, %v2648
      %v2682 = vadd.f32 %v2611, %v2648
      %v2683 = vadd.f32 %v2612, %v2648
      %v2684 = vadd.f32 %v2613, %v2648
      %v2685 = vadd.f32 %v2614, %v2648
      %v2686 = vadd.f32 %v2615, %v2648
      %v2687 = vadd.f32 %v2616, %v2648
      %v2688 = vadd.f32 %v2617, %v2648
      %v2689 = vadd.f32 %v2618, %v2648
      %v2690 = vadd.f32 %v2619, %v2648
      %v2691 = vadd.f32 %v2620, %v2648
      %v2692 = vadd.f32 %v2621, %v2648
      %v2693 = vadd.f32 %v2622, %v2648
      %v2694 = vadd.f32 %v2623, %v2648
      %v2695 = vadd.f32 %v2624, %v2648
      %v2696 = vadd.f32 %v2625, %v2648
      %v2697 = vadd.f32 %v2626, %v2648
      %v2698 = vadd.f32 %v2627, %v2648
      %v2699 = vadd.f32 %v2628, %v2648
      %v2700 = vadd.f32 %v2629, %v2648
      %v2701 = vadd.f32 %v2630, %v2648
      %v2702 = vadd.f32 %v2631, %v2648
      %v2703 = vadd.f32 %v2632, %v2648
      %v2704 = vadd.f32 %v2633, %v2648
      %v2705 = vadd.f32 %v2634, %v2648
      %v2706 = vadd.f32 %v2635, %v2648
      %v2707 = vadd.f32 %v2636, %v2648
      %v2708 = vadd.f32 %v2637, %v2648
      %v2709 = vadd.f32 %v2638, %v2648
      %v2710 = vadd.f32 %v2639, %v2648
      %v2711 = vadd.f32 %v2640, %v2648
      %v2712 = vadd.f32 %v2641, %v2648
      %v2713 = vadd.f32 %v2642, %v2648
      %v2714 = vmax.f32 %v2650, 0.0
      %v2715 = vmax.f32 %v2651, 0.0
      %v2716 = vmax.f32 %v2652, 0.0
      %v2717 = vmax.f32 %v2653, 0.0
      %v2718 = vmax.f32 %v2654, 0.0
      %v2719 = vmax.f32 %v2655, 0.0
      %v2720 = vmax.f32 %v2656, 0.0
      %v2721 = vmax.f32 %v2657, 0.0
      %v2722 = vmax.f32 %v2658, 0.0
      %v2723 = vmax.f32 %v2659, 0.0
      %v2724 = vmax.f32 %v2660, 0.0
      %v2725 = vmax.f32 %v2661, 0.0
      %v2726 = vmax.f32 %v2662, 0.0
      %v2727 = vmax.f32 %v2663, 0.0
      %v2728 = vmax.f32 %v2664, 0.0
      %v2729 = vmax.f32 %v2665, 0.0
      %v2730 = vmax.f32 %v2666, 0.0
      %v2731 = vmax.f32 %v2667, 0.0
      %v2732 = vmax.f32 %v2668, 0.0
      %v2733 = vmax.f32 %v2669, 0.0
      %v2734 = vmax.f32 %v2670, 0.0
      %v2735 = vmax.f32 %v2671, 0.0
      %v2736 = vmax.f32 %v2672, 0.0
      %v2737 = vmax.f32 %v2673, 0.0
      %v2738 = vmax.f32 %v2674, 0.0
      %v2739 = vmax.f32 %v2675, 0.0
      %v2740 = vmax.f32 %v2676, 0.0
      %v2741 = vmax.f32 %v2677, 0.0
      %v2742 = vmax.f32 %v2678, 0.0
      %v2743 = vmax.f32 %v2679, 0.0
      %v2744 = vmax.f32 %v2680, 0.0
      %v2745 = vmax.f32 %v2681, 0.0
      %v2746 = vmax.f32 %v2682, 0.0
      %v2747 = vmax.f32 %v2683, 0.0
      %v2748 = vmax.f32 %v2684, 0.0
      %v2749 = vmax.f32 %v2685, 0.0
      %v2750 = vmax.f32 %v2686, 0.0
      %v2751 = vmax.f32 %v2687, 0.0
      %v2752 = vmax.f32 %v2688, 0.0
      %v2753 = vmax.f32 %v2689, 0.0
      %v2754 = vmax.f32 %v2690, 0.0
      %v2755 = vmax.f32 %v2691, 0.0
      %v2756 = vmax.f32 %v2692, 0.0
      %v2757 = vmax.f32 %v2693, 0.0
      %v2758 = vmax.f32 %v2694, 0.0
      %v2759 = vmax.f32 %v2695, 0.0
      %v2760 = vmax.f32 %v2696, 0.0
      %v2761 = vmax.f32 %v2697, 0.0
      %v2762 = vmax.f32 %v2698, 0.0
      %v2763 = vmax.f32 %v2699, 0.0
      %v2764 = vmax.f32 %v2700, 0.0
      %v2765 = vmax.f32 %v2701, 0.0
      %v2766 = vmax.f32 %v2702, 0.0
      %v2767 = vmax.f32 %v2703, 0.0
      %v2768 = vmax.f32 %v2704, 0.0
      %v2769 = vmax.f32 %v2705, 0.0
      %v2770 = vmax.f32 %v2706, 0.0
      %v2771 = vmax.f32 %v2707, 0.0
      %v2772 = vmax.f32 %v2708, 0.0
      %v2773 = vmax.f32 %v2709, 0.0
      %v2774 = vmax.f32 %v2710, 0.0
      %v2775 = vmax.f32 %v2711, 0.0
      %v2776 = vmax.f32 %v2712, 0.0
      %v2777 = vmax.f32 %v2713, 0.0
      %2778 = vst [vmem:[%s279] sm:$0xff] %v2714
      %2779 = vst [vmem:[%s279 + $0x8] sm:$0xff] %v2715
      %2780 = vst [vmem:[%s279 + $0x10] sm:$0xff] %v2716
      %2781 = vst [vmem:[%s279 + $0x18] sm:$0xff] %v2717
      %2782 = vst [vmem:[%s279 + $0x20] sm:$0xff] %v2718
      %2783 = vst [vmem:[%s279 + $0x28] sm:$0xff] %v2719
      %2784 = vst [vmem:[%s279 + $0x30] sm:$0xff] %v2720
      %2785 = vst [vmem:[%s279 + $0x38] sm:$0xff] %v2721
      %2786 = vst [vmem:[%s279 + $0x40] sm:$0xff] %v2722
      %2787 = vst [vmem:[%s279 + $0x48] sm:$0xff] %v2723
      %2788 = vst [vmem:[%s279 + $0x50] sm:$0xff] %v2724
      %2789 = vst [vmem:[%s279 + $0x58] sm:$0xff] %v2725
      %2790 = vst [vmem:[%s279 + $0x60] sm:$0xff] %v2726
      %2791 = vst [vmem:[%s279 + $0x68] sm:$0xff] %v2727
      %2792 = vst [vmem:[%s279 + $0x70] sm:$0xff] %v2728
      %2793 = vst [vmem:[%s279 + $0x78] sm:$0xff] %v2729
      %2794 = vst [vmem:[%s279 + $0x80] sm:$0xff] %v2730
      %2795 = vst [vmem:[%s279 + $0x88] sm:$0xff] %v2731
      %2796 = vst [vmem:[%s279 + $0x90] sm:$0xff] %v2732
      %2797 = vst [vmem:[%s279 + $0x98] sm:$0xff] %v2733
      %2798 = vst [vmem:[%s279 + $0xa0] sm:$0xff] %v2734
      %2799 = vst [vmem:[%s279 + $0xa8] sm:$0xff] %v2735
      %2800 = vst [vmem:[%s279 + $0xb0] sm:$0xff] %v2736
      %2801 = vst [vmem:[%s279 + $0xb8] sm:$0xff] %v2737
      %2802 = vst [vmem:[%s279 + $0xc0] sm:$0xff] %v2738
      %2803 = vst [vmem:[%s279 + $0xc8] sm:$0xff] %v2739
      %2804 = vst [vmem:[%s279 + $0xd0] sm:$0xff] %v2740
      %2805 = vst [vmem:[%s279 + $0xd8] sm:$0xff] %v2741
      %2806 = vst [vmem:[%s279 + $0xe0] sm:$0xff] %v2742
      %2807 = vst [vmem:[%s279 + $0xe8] sm:$0xff] %v2743
      %2808 = vst [vmem:[%s279 + $0xf0] sm:$0xff] %v2744
      %2809 = vst [vmem:[%s279 + $0xf8] sm:$0xff] %v2745
      %2810 = vst [vmem:[%s279 + $0x100] sm:$0xff] %v2746
      %2811 = vst [vmem:[%s279 + $0x108] sm:$0xff] %v2747
      %2812 = vst [vmem:[%s279 + $0x110] sm:$0xff] %v2748
      %2813 = vst [vmem:[%s279 + $0x118] sm:$0xff] %v2749
      %2814 = vst [vmem:[%s279 + $0x120] sm:$0xff] %v2750
      %2815 = vst [vmem:[%s279 + $0x128] sm:$0xff] %v2751
      %2816 = vst [vmem:[%s279 + $0x130] sm:$0xff] %v2752
      %2817 = vst [vmem:[%s279 + $0x138] sm:$0xff] %v2753
      %2818 = vst [vmem:[%s279 + $0x140] sm:$0xff] %v2754
      %2819 = vst [vmem:[%s279 + $0x148] sm:$0xff] %v2755
      %2820 = vst [vmem:[%s279 + $0x150] sm:$0xff] %v2756
      %2821 = vst [vmem:[%s279 + $0x158] sm:$0xff] %v2757
      %2822 = vst [vmem:[%s279 + $0x160] sm:$0xff] %v2758
      %2823 = vst [vmem:[%s279 + $0x168] sm:$0xff] %v2759
      %2824 = vst [vmem:[%s279 + $0x170] sm:$0xff] %v2760
      %2825 = vst [vmem:[%s279 + $0x178] sm:$0xff] %v2761
      %2826 = vst [vmem:[%s279 + $0x180] sm:$0xff] %v2762
      %2827 = vst [vmem:[%s279 + $0x188] sm:$0xff] %v2763
      %2828 = vst [vmem:[%s279 + $0x190] sm:$0xff] %v2764
      %2829 = vst [vmem:[%s279 + $0x198] sm:$0xff] %v2765
      %2830 = vst [vmem:[%s279 + $0x1a0] sm:$0xff] %v2766
      %2831 = vst [vmem:[%s279 + $0x1a8] sm:$0xff] %v2767
      %2832 = vst [vmem:[%s279 + $0x1b0] sm:$0xff] %v2768
      %2833 = vst [vmem:[%s279 + $0x1b8] sm:$0xff] %v2769
      %2834 = vst [vmem:[%s279 + $0x1c0] sm:$0xff] %v2770
      %2835 = vst [vmem:[%s279 + $0x1c8] sm:$0xff] %v2771
      %2836 = vst [vmem:[%s279 + $0x1d0] sm:$0xff] %v2772
      %2837 = vst [vmem:[%s279 + $0x1d8] sm:$0xff] %v2773
      %2838 = vst [vmem:[%s279 + $0x1e0] sm:$0xff] %v2774
      %2839 = vst [vmem:[%s279 + $0x1e8] sm:$0xff] %v2775
      %2840 = vst [vmem:[%s279 + $0x1f0] sm:$0xff] %v2776
      %2841 = vst [vmem:[%s279 + $0x1f8] sm:$0xff] %v2777
      %s2842 = smul.u32 64, %s20
      %p2843 = scmp.lt.s32.totalorder %s2842, 127
      %s2844 = scalar_select %p2843, %s2842, 127
      %p2845 = scmp.lt.s32.totalorder %s19, 0
      %s2846 = scalar_select %p2845, %s19, 0
      %s2847 = sadd.s32 %s2846, %s2844
      %s2848 = smul.addr %s2847, 8
      %s2849 = scalar_lea.vmem %s4, %s2848
      // Predicated region
      $region37: #{convt_forward.1} parent=35 // pred_check
        %p2850 = pneg %p153
      $region38: #{convt_forward.1} parent=35 // pred_check_branch
        %2852 = sbr.rel (%p2850) target = $region40
      $region39: #{convt_forward.1} parent=35 // pred_region
        %s2853 = smul.u32 64, %s20
      $region40: #{convt_forward.1} parent=35 // pred_fallthru
        _
    $region36: #{convt_forward.1} parent=5 // pred_fallthru
      _
    %p2854 = scmp.le.s32.totalorder 2, %s10
    // Predicated region
    $region41: #{convt_forward.1} parent=5 // pred_check
      %p2855 = pneg %p2854
    $region42: #{convt_forward.1} parent=5 // pred_check_branch
      %2857 = sbr.rel (%p2855) target = $region44
    $region43: #{convt_forward.1} parent=5 // pred_region
      %s2858 = ssub.s32 %s10, 2
      // Predicated region
      $region45: #{convt_forward.1} parent=43 // pred_check
        %p2859 = pneg %p159
      $region46: #{convt_forward.1} parent=43 // pred_check_branch
        %2861 = sbr.rel (%p2859) target = $region48
      $region47: #{convt_forward.1} parent=43 // pred_region
        %s2862 = smul.u32 64, %s22
        %p2863 = scmp.lt.s32.totalorder %s2862, 127
        %s2864 = scalar_select %p2863, %s2862, 127
        %p2865 = scmp.lt.s32.totalorder %s21, 0
        %s2866 = scalar_select %p2865, %s21, 0
        %s2867 = sadd.s32 %s2866, %s2864
        %s2868 = smul.addr %s2867, 8
        %s2869 = scalar_lea.vmem %s4, %s2868
      $region48: #{convt_forward.1} parent=43 // pred_fallthru
        _
    $region44: #{convt_forward.1} parent=5 // pred_fallthru
      _
  $region6: #{convt_forward.1} parent=0 // loop_footer
    %s14 = sadd.s32 1, %s10
  $region7: #{convt_forward.1} parent=0 // loop_footer_branch
    %9 = sbr.rel target = $region3
  $region8: #{convt_forward.1} parent=0 // loop_exit
    _

</llo_original>
